<compile_context>
chip_gen: v5e
topology: v5e:2x2
jax: 0.10.0
libtpu: 0.0.40
codegen_flags: <defaults>
</compile_context>

<pallas_src>
import jax
import jax.numpy as jnp
from jax.experimental import pallas as pl
from jax.experimental.pallas import tpu as pltpu


_LANE = 128
_SUBLANE = 8


def _round_up(x, m):
    return (x + m - 1) // m * m


# ----------------------------- kernel --------------------------------------- #

def _generator_kernel(x_ref,
                      w0_ref, b0_ref,
                      w1_ref, b1_ref,
                      w2_ref, b2_ref,
                      w3_ref, b3_ref,
                      wl_ref, bl_ref,
                      o_ref):
    # Trunk: in -> 64 -> 128 -> 512 -> 1024, all weights VMEM-resident.
    # Recomputed per grid step (tiny) so the grid axis stays "parallel".
    h = x_ref[...]
    for w_ref, b_ref in ((w0_ref, b0_ref), (w1_ref, b1_ref),
                         (w2_ref, b2_ref), (w3_ref, b3_ref)):
        h = jnp.maximum(
            jnp.dot(h, w_ref[...], preferred_element_type=jnp.float32)
            + b_ref[...], 0.0)
    # forward() applies non_linearity(self.dec(x)); relu(relu(.)) == relu(.).

    # Last layer: (B_pad, 1024) @ (1024, TN) + (1, TN), one contiguous bf16
    # weight slab per grid step, f32 accumulation.
    o_ref[...] = (
        jnp.dot(h.astype(jnp.bfloat16), wl_ref[0],
                preferred_element_type=jnp.float32)
        + bl_ref[0])


# ----------------------------- weight prep (run ONCE) ----------------------- #

def prepare_generator_params(params, n_points, *, tn=2048):
    """One-time prep: bf16 cast + pad + contiguous tile blocking of w_last.

    Do NOT call per forward pass — the whole point is to keep the per-call HBM
    traffic down to the single bf16 weight stream inside the kernel.
    """
    hidden = params["w_last"].shape[0]            # 1024
    n_out = 3 * n_points
    n_out_lane = _round_up(n_out, _LANE)

    tn = min(_round_up(tn, _LANE), n_out_lane)
    grid_n = pl.cdiv(n_out_lane, tn)
    if grid_n > 1 and grid_n % 2 == 1:
        # v7x megacore: even grid_n lets both TensorCores stream half of w_last.
        tn = _round_up(-(-n_out_lane // (grid_n + 1)), _LANE)
        grid_n = pl.cdiv(n_out_lane, tn)
    n_out_pad = grid_n * tn

    wl = params["w_last"].astype(jnp.bfloat16)                 # (hidden, n_out)
    bl = params["b_last"].astype(jnp.float32).reshape(1, -1)   # (1, n_out)
    if n_out_pad != n_out:
        wl = jnp.pad(wl, ((0, 0), (0, n_out_pad - n_out)))
        bl = jnp.pad(bl, ((0, 0), (0, n_out_pad - n_out)))
    # Pre-block into contiguous (hidden, tn) slabs: one DMA per grid step.
    wl_blocks = wl.reshape(hidden, grid_n, tn).transpose(1, 0, 2)   # (g, 1024, tn)
    bl_blocks = bl.reshape(1, grid_n, tn).transpose(1, 0, 2)        # (g, 1, tn)

    return {
        "trunk": tuple(params[k] for k in
                       ("w0", "b0", "w1", "b1", "w2", "b2", "w3", "b3")),
        "wl_blocks": wl_blocks,
        "bl_blocks": bl_blocks,
        "hidden": hidden,
        "tn": tn,
        "grid_n": grid_n,
        "n_out": n_out,
        "n_out_pad": n_out_pad,
    }


# ----------------------------- forward -------------------------------------- #

def point_cloud_generator_forward(x, prep, n_points):
    """x: (B, in_size) float32. prep: output of prepare_generator_params."""
    B, in_size = x.shape
    n_out = 3 * n_points
    assert n_out == prep["n_out"]

    hidden = prep["hidden"]
    tn = prep["tn"]
    grid_n = prep["grid_n"]
    n_out_pad = prep["n_out_pad"]
    trunk = prep["trunk"]

    b_pad = _round_up(max(B, _SUBLANE), _SUBLANE)
    x_p = jnp.zeros((b_pad, in_size), x.dtype).at[:B, :].set(x)

    dims = [in_size] + [w.shape[1] for w in trunk[0::2]]
    trunk_flops = 2 * b_pad * sum(a * b for a, b in zip(dims[:-1], dims[1:]))
    trunk_bytes = sum(int(t.size) * 4 for t in trunk)
    cost = pl.CostEstimate(
        flops=int(grid_n * trunk_flops + 2 * b_pad * hidden * n_out_pad),
        transcendentals=0,
        bytes_accessed=int(hidden * n_out_pad * 2        # streamed bf16 w_last
                           + n_out_pad * 4               # streamed bias
                           + trunk_bytes                 # resident trunk weights
                           + b_pad * in_size * 4         # x
                           + b_pad * n_out_pad * 4),     # output
    )

    def resident(shape):
        # Full-array block, constant index => loaded into VMEM once, reused.
        return pl.BlockSpec(shape, lambda j: (0,) * len(shape))

    in_specs = [resident(x_p.shape)]
    in_specs += [resident(t.shape) for t in trunk]
    in_specs += [
        pl.BlockSpec((1, hidden, tn), lambda j: (j, 0, 0)),   # w_last tiles
        pl.BlockSpec((1, 1, tn), lambda j: (j, 0, 0)),        # bias tiles
    ]

    y = pl.pallas_call(
        _generator_kernel,
        out_shape=jax.ShapeDtypeStruct((b_pad, n_out_pad), jnp.float32),
        grid=(grid_n,),
        in_specs=in_specs,
        out_specs=pl.BlockSpec((b_pad, tn), lambda j: (0, j)),
        compiler_params=pltpu.CompilerParams(
            dimension_semantics=("parallel",)),
        cost_estimate=cost,
    )(x_p, *trunk, prep["wl_blocks"], prep["bl_blocks"])

    # Drop padding, then x.view(B, 3, -1) equivalent.
    return y[:B, :n_out].reshape(B, 3, n_points)


# ----------------------------- params / reference --------------------------- #

def _xavier_uniform(key, shape):
    # shape = (out_features, in_features)  (PyTorch Linear weight layout)
    fan_out, fan_in = shape
    limit = (6.0 / (fan_in + fan_out)) ** 0.5
    return jax.random.uniform(key, shape, jnp.float32, -limit, limit)


def _torch_linear_default(key, out_f, in_f):
    # PyTorch nn.Linear default: U(-1/sqrt(in), 1/sqrt(in)) for weight and bias.
    kw, kb = jax.random.split(key)
    bound = 1.0 / (in_f ** 0.5)
    w = jax.random.uniform(kw, (out_f, in_f), jnp.float32, -bound, bound)
    b = jax.random.uniform(kb, (out_f,), jnp.float32, -bound, bound)
    return w, b


def make_params(key, in_size, layer_sizes, n_points):
    """Deterministic synthetic params. Weights returned transposed to (in, out)."""
    dims = [in_size] + list(layer_sizes)
    keys = jax.random.split(key, len(layer_sizes) + 1)

    params = {}
    for i in range(len(layer_sizes)):
        w, b = _torch_linear_default(keys[i], dims[i + 1], dims[i])
        params[f"w{i}"] = jnp.asarray(w.T)                     # (in, out)
        params[f"b{i}"] = jnp.asarray(b).reshape(1, -1)        # (1, out)

    n_out = n_points * 3
    w_last = _xavier_uniform(keys[-1], (n_out, layer_sizes[-1]))
    # nn.Linear bias default init (xavier_uniform_ only touches the weight):
    bound = 1.0 / (layer_sizes[-1] ** 0.5)
    b_last = jax.random.uniform(jax.random.fold_in(keys[-1], 1),
                                (n_out,), jnp.float32, -bound, bound)
    params["w_last"] = jnp.asarray(w_last.T)                   # (1024, n_out)
    params["b_last"] = jnp.asarray(b_last).reshape(1, -1)      # (1, n_out)
    return params


def reference_forward(x, params, n_points):
    # Pure-JAX reference matching the kernel's numerics: f32 trunk, bf16 inputs
    # to the last matmul with f32 accumulation.
    h = x
    for i in range(4):
        h = jnp.maximum(h @ params[f"w{i}"] + params[f"b{i}"], 0.0)
    h = jnp.maximum(h, 0.0)
    y = jnp.dot(h.astype(jnp.bfloat16),
                params["w_last"].astype(jnp.bfloat16),
                preferred_element_type=jnp.float32) + params["b_last"]
    return y.reshape(x.shape[0], 3, n_points)


if __name__ == "__main__":
    B = 2
    in_size = 32
    n_points = 8
    layer_sizes = [64, 128, 512, 1024]

    key = jax.random.PRNGKey(0)
    kx, kp = jax.random.split(key)

    x = jax.random.normal(kx, (B, in_size), dtype=jnp.float32)
    params = make_params(kp, in_size, layer_sizes, n_points)

    # One-time weight prep (bf16 cast + pad + contiguous tile blocking).
    prep = prepare_generator_params(params, n_points)
    prep = jax.tree_util.tree_map(
        lambda v: jax.block_until_ready(v) if isinstance(v, jax.Array) else v, prep)

    out = point_cloud_generator_forward(x, prep, n_points)
    out = jax.block_until_ready(out)

    ref = reference_forward(x, params, n_points)
    assert out.shape == (B, 3, n_points), out.shape
    assert jnp.allclose(out, ref, atol=2e-3, rtol=2e-3), "mismatch vs JAX reference"

    print("KERNEL_OK")
</pallas_src>

<mosaic_0001>
module attributes {stable_mosaic.version = 11 : i64} {
  func.func @_generator_kernel(%arg0: i32, %arg1: memref<8x32xf32, #tpu.memory_space<vmem>>, %arg2: memref<32x64xf32, #tpu.memory_space<vmem>>, %arg3: memref<1x64xf32, #tpu.memory_space<vmem>>, %arg4: memref<64x128xf32, #tpu.memory_space<vmem>>, %arg5: memref<1x128xf32, #tpu.memory_space<vmem>>, %arg6: memref<128x512xf32, #tpu.memory_space<vmem>>, %arg7: memref<1x512xf32, #tpu.memory_space<vmem>>, %arg8: memref<512x1024xf32, #tpu.memory_space<vmem>>, %arg9: memref<1x1024xf32, #tpu.memory_space<vmem>>, %arg10: memref<1x1024x128xbf16, #tpu.memory_space<vmem>>, %arg11: memref<1x1x128xf32, #tpu.memory_space<vmem>>, %arg12: memref<8x128xf32, #tpu.memory_space<vmem>>) attributes {dimension_semantics = [#tpu.dimension_semantics<parallel>], iteration_bounds = array<i64: 1>, scalar_prefetch = 0 : i64, scratch_operands = 0 : i64, tpu.core_type = #tpu.core_type<tc>, window_params = [{pipeline_mode = #tpu.pipeline_mode<synchronous>, transform_indices = @transform_0, window_bounds = array<i64: 8, 32>}, {pipeline_mode = #tpu.pipeline_mode<synchronous>, transform_indices = @transform_1, window_bounds = array<i64: 32, 64>}, {pipeline_mode = #tpu.pipeline_mode<synchronous>, transform_indices = @transform_2, window_bounds = array<i64: 1, 64>}, {pipeline_mode = #tpu.pipeline_mode<synchronous>, transform_indices = @transform_3, window_bounds = array<i64: 64, 128>}, {pipeline_mode = #tpu.pipeline_mode<synchronous>, transform_indices = @transform_4, window_bounds = array<i64: 1, 128>}, {pipeline_mode = #tpu.pipeline_mode<synchronous>, transform_indices = @transform_5, window_bounds = array<i64: 128, 512>}, {pipeline_mode = #tpu.pipeline_mode<synchronous>, transform_indices = @transform_6, window_bounds = array<i64: 1, 512>}, {pipeline_mode = #tpu.pipeline_mode<synchronous>, transform_indices = @transform_7, window_bounds = array<i64: 512, 1024>}, {pipeline_mode = #tpu.pipeline_mode<synchronous>, transform_indices = @transform_8, window_bounds = array<i64: 1, 1024>}, {transform_indices = @transform_9, window_bounds = array<i64: 1, 1024, 128>}, {transform_indices = @transform_10, window_bounds = array<i64: 1, 1, 128>}, {transform_indices = @transform_11, window_bounds = array<i64: 8, 128>}]} {
    %c0 = arith.constant 0 : index
    %c0_0 = arith.constant 0 : index
    %0 = vector.load %arg1[%c0, %c0_0] : memref<8x32xf32, #tpu.memory_space<vmem>>, vector<8x32xf32>
    %c0_1 = arith.constant 0 : index
    %c0_2 = arith.constant 0 : index
    %1 = vector.load %arg2[%c0_1, %c0_2] : memref<32x64xf32, #tpu.memory_space<vmem>>, vector<32x64xf32>
    %cst = arith.constant dense<0.000000e+00> : vector<8x64xf32>
    %2 = tpu.matmul %0, %1, %cst {dimension_numbers = #tpu.dot_dimension_numbers<[1], [0], [0], [1], [0, 0, 1, 1], [], []>} : vector<8x32xf32>, vector<32x64xf32>, vector<8x64xf32> -> vector<8x64xf32>
    %c0_3 = arith.constant 0 : index
    %c0_4 = arith.constant 0 : index
    %3 = vector.load %arg3[%c0_3, %c0_4] : memref<1x64xf32, #tpu.memory_space<vmem>>, vector<1x64xf32>
    %4 = vector.broadcast %3 : vector<1x64xf32> to vector<8x64xf32>
    %5 = arith.addf %2, %4 : vector<8x64xf32>
    %cst_5 = arith.constant 0.000000e+00 : f32
    %6 = vector.broadcast %cst_5 : f32 to vector<8x64xf32>
    %7 = arith.maximumf %5, %6 : vector<8x64xf32>
    %c0_6 = arith.constant 0 : index
    %c0_7 = arith.constant 0 : index
    %8 = vector.load %arg4[%c0_6, %c0_7] : memref<64x128xf32, #tpu.memory_space<vmem>>, vector<64x128xf32>
    %cst_8 = arith.constant dense<0.000000e+00> : vector<8x128xf32>
    %9 = tpu.matmul %7, %8, %cst_8 {dimension_numbers = #tpu.dot_dimension_numbers<[1], [0], [0], [1], [0, 0, 1, 1], [], []>} : vector<8x64xf32>, vector<64x128xf32>, vector<8x128xf32> -> vector<8x128xf32>
    %c0_9 = arith.constant 0 : index
    %c0_10 = arith.constant 0 : index
    %10 = vector.load %arg5[%c0_9, %c0_10] : memref<1x128xf32, #tpu.memory_space<vmem>>, vector<1x128xf32>
    %11 = vector.broadcast %10 : vector<1x128xf32> to vector<8x128xf32>
    %12 = arith.addf %9, %11 : vector<8x128xf32>
    %cst_11 = arith.constant 0.000000e+00 : f32
    %13 = vector.broadcast %cst_11 : f32 to vector<8x128xf32>
    %14 = arith.maximumf %12, %13 : vector<8x128xf32>
    %c0_12 = arith.constant 0 : index
    %c0_13 = arith.constant 0 : index
    %15 = vector.load %arg6[%c0_12, %c0_13] : memref<128x512xf32, #tpu.memory_space<vmem>>, vector<128x512xf32>
    %cst_14 = arith.constant dense<0.000000e+00> : vector<8x512xf32>
    %16 = tpu.matmul %14, %15, %cst_14 {dimension_numbers = #tpu.dot_dimension_numbers<[1], [0], [0], [1], [0, 0, 1, 1], [], []>} : vector<8x128xf32>, vector<128x512xf32>, vector<8x512xf32> -> vector<8x512xf32>
    %c0_15 = arith.constant 0 : index
    %c0_16 = arith.constant 0 : index
    %17 = vector.load %arg7[%c0_15, %c0_16] : memref<1x512xf32, #tpu.memory_space<vmem>>, vector<1x512xf32>
    %18 = vector.broadcast %17 : vector<1x512xf32> to vector<8x512xf32>
    %19 = arith.addf %16, %18 : vector<8x512xf32>
    %cst_17 = arith.constant 0.000000e+00 : f32
    %20 = vector.broadcast %cst_17 : f32 to vector<8x512xf32>
    %21 = arith.maximumf %19, %20 : vector<8x512xf32>
    %c0_18 = arith.constant 0 : index
    %c0_19 = arith.constant 0 : index
    %22 = vector.load %arg8[%c0_18, %c0_19] : memref<512x1024xf32, #tpu.memory_space<vmem>>, vector<512x1024xf32>
    %cst_20 = arith.constant dense<0.000000e+00> : vector<8x1024xf32>
    %23 = tpu.matmul %21, %22, %cst_20 {dimension_numbers = #tpu.dot_dimension_numbers<[1], [0], [0], [1], [0, 0, 1, 1], [], []>} : vector<8x512xf32>, vector<512x1024xf32>, vector<8x1024xf32> -> vector<8x1024xf32>
    %c0_21 = arith.constant 0 : index
    %c0_22 = arith.constant 0 : index
    %24 = vector.load %arg9[%c0_21, %c0_22] : memref<1x1024xf32, #tpu.memory_space<vmem>>, vector<1x1024xf32>
    %25 = vector.broadcast %24 : vector<1x1024xf32> to vector<8x1024xf32>
    %26 = arith.addf %23, %25 : vector<8x1024xf32>
    %cst_23 = arith.constant 0.000000e+00 : f32
    %27 = vector.broadcast %cst_23 : f32 to vector<8x1024xf32>
    %28 = arith.maximumf %26, %27 : vector<8x1024xf32>
    %29 = arith.truncf %28 : vector<8x1024xf32> to vector<8x1024xbf16>
    %c0_24 = arith.constant 0 : index
    %c0_25 = arith.constant 0 : index
    %c0_26 = arith.constant 0 : index
    %30 = vector.load %arg10[%c0_24, %c0_25, %c0_26] : memref<1x1024x128xbf16, #tpu.memory_space<vmem>>, vector<1x1024x128xbf16>
    %31 = vector.shape_cast %30 : vector<1x1024x128xbf16> to vector<1024x128xbf16>
    %cst_27 = arith.constant dense<0.000000e+00> : vector<8x128xf32>
    %32 = tpu.matmul %29, %31, %cst_27 {dimension_numbers = #tpu.dot_dimension_numbers<[1], [0], [0], [1], [0, 0, 1, 1], [], []>} : vector<8x1024xbf16>, vector<1024x128xbf16>, vector<8x128xf32> -> vector<8x128xf32>
    %c0_28 = arith.constant 0 : index
    %c0_29 = arith.constant 0 : index
    %c0_30 = arith.constant 0 : index
    %33 = vector.load %arg11[%c0_28, %c0_29, %c0_30] : memref<1x1x128xf32, #tpu.memory_space<vmem>>, vector<1x1x128xf32>
    %34 = vector.shape_cast %33 : vector<1x1x128xf32> to vector<1x128xf32>
    %35 = vector.broadcast %34 : vector<1x128xf32> to vector<8x128xf32>
    %36 = arith.addf %32, %35 : vector<8x128xf32>
    %c0_31 = arith.constant 0 : index
    %c0_32 = arith.constant 0 : index
    %37 = vector.load %arg12[%c0_31, %c0_32] : memref<8x128xf32, #tpu.memory_space<vmem>>, vector<8x128xf32>
    tpu.vector_store %arg12[%c0_31, %c0_32], %36 {strides = array<i32>} : memref<8x128xf32, #tpu.memory_space<vmem>>, vector<8x128xf32>,
    return
  }
  func.func @transform_0(%arg0: i32) -> (i32, i32) {
    %c0_i32 = arith.constant 0 : i32
    %c0_i32_0 = arith.constant 0 : i32
    %c0_i32_1 = arith.constant 0 : i32
    return %c0_i32, %c0_i32_0 : i32, i32
  }
  func.func @transform_1(%arg0: i32) -> (i32, i32) {
    %c0_i32 = arith.constant 0 : i32
    %c0_i32_0 = arith.constant 0 : i32
    %c0_i32_1 = arith.constant 0 : i32
    return %c0_i32, %c0_i32_0 : i32, i32
  }
  func.func @transform_2(%arg0: i32) -> (i32, i32) {
    %c0_i32 = arith.constant 0 : i32
    %c0_i32_0 = arith.constant 0 : i32
    %c0_i32_1 = arith.constant 0 : i32
    return %c0_i32, %c0_i32_0 : i32, i32
  }
  func.func @transform_3(%arg0: i32) -> (i32, i32) {
    %c0_i32 = arith.constant 0 : i32
    %c0_i32_0 = arith.constant 0 : i32
    %c0_i32_1 = arith.constant 0 : i32
    return %c0_i32, %c0_i32_0 : i32, i32
  }
  func.func @transform_4(%arg0: i32) -> (i32, i32) {
    %c0_i32 = arith.constant 0 : i32
    %c0_i32_0 = arith.constant 0 : i32
    %c0_i32_1 = arith.constant 0 : i32
    return %c0_i32, %c0_i32_0 : i32, i32
  }
  func.func @transform_5(%arg0: i32) -> (i32, i32) {
    %c0_i32 = arith.constant 0 : i32
    %c0_i32_0 = arith.constant 0 : i32
    %c0_i32_1 = arith.constant 0 : i32
    return %c0_i32, %c0_i32_0 : i32, i32
  }
  func.func @transform_6(%arg0: i32) -> (i32, i32) {
    %c0_i32 = arith.constant 0 : i32
    %c0_i32_0 = arith.constant 0 : i32
    %c0_i32_1 = arith.constant 0 : i32
    return %c0_i32, %c0_i32_0 : i32, i32
  }
  func.func @transform_7(%arg0: i32) -> (i32, i32) {
    %c0_i32 = arith.constant 0 : i32
    %c0_i32_0 = arith.constant 0 : i32
    %c0_i32_1 = arith.constant 0 : i32
    return %c0_i32, %c0_i32_0 : i32, i32
  }
  func.func @transform_8(%arg0: i32) -> (i32, i32) {
    %c0_i32 = arith.constant 0 : i32
    %c0_i32_0 = arith.constant 0 : i32
    %c0_i32_1 = arith.constant 0 : i32
    return %c0_i32, %c0_i32_0 : i32, i32
  }
  func.func @transform_9(%arg0: i32) -> (i32, i32, i32) {
    %c0_i32 = arith.constant 0 : i32
    %c0_i32_0 = arith.constant 0 : i32
    %c0_i32_1 = arith.constant 0 : i32
    return %arg0, %c0_i32, %c0_i32_0 : i32, i32, i32
  }
  func.func @transform_10(%arg0: i32) -> (i32, i32, i32) {
    %c0_i32 = arith.constant 0 : i32
    %c0_i32_0 = arith.constant 0 : i32
    %c0_i32_1 = arith.constant 0 : i32
    return %arg0, %c0_i32, %c0_i32_0 : i32, i32, i32
  }
  func.func @transform_11(%arg0: i32) -> (i32, i32) {
    %c0_i32 = arith.constant 0 : i32
    %c0_i32_0 = arith.constant 0 : i32
    return %c0_i32, %arg0 : i32, i32
  }
}

</mosaic_0001>

<llo_original>
// kernel: tpu_custom_call.1
$region0: #{tpu_custom_call.1}
  #allocation0 [shape = 'u32[]', space=smem, size = 0x4, offset = 0x4, fixed_abs, tag = 'smem constant byte address 0x4 - core index']
  #allocation1 [shape = 'u32[72,128]{1,0:T(1,128)}', space=vmem, size = 0x9000, scoped, tag = 'internal scratch']
  %s0 = inlined_call_operand.hbm [shape: f32[8,32], index: 0, kind: input, shape index: {}]
  %s1 = inlined_call_operand.hbm [shape: f32[32,64], index: 1, kind: input, shape index: {}]
  %s2 = inlined_call_operand.hbm [shape: f32[1,64], index: 2, kind: input, shape index: {}]
  %s3 = inlined_call_operand.hbm [shape: f32[64,128], index: 3, kind: input, shape index: {}]
  %s4 = inlined_call_operand.hbm [shape: f32[1,128], index: 4, kind: input, shape index: {}]
  %s5 = inlined_call_operand.hbm [shape: f32[128,512], index: 5, kind: input, shape index: {}]
  %s6 = inlined_call_operand.hbm [shape: f32[1,512], index: 6, kind: input, shape index: {}]
  %s7 = inlined_call_operand.hbm [shape: f32[512,1024], index: 7, kind: input, shape index: {}]
  %s8 = inlined_call_operand.hbm [shape: f32[1,1024], index: 8, kind: input, shape index: {}]
  %s9 = inlined_call_operand.hbm [shape: bf16[1,1024,128], index: 9, kind: input, shape index: {}]
  %s10 = inlined_call_operand.hbm [shape: f32[1,1,128], index: 10, kind: input, shape index: {}]
  %s11 = inlined_call_operand.hbm [shape: f32[8,128], index: 11, kind: output, shape index: {}]
  %s12 = sld [smem:[#allocation0]]
  $region98: #{tpu_custom_call.1} parent=0
    _
  %s14 = ssub.s32 1, %s12
  %s15 = scalar_select 0, %s14, %s12
  $region1: #{tpu_custom_call.1} parent=0
    #allocation2 [shape = 'u8[4096]{0}', space=vmem, size = 0x1000, scoped, tag = 'input window, operand 0, single buffered']
    #allocation3 [shape = 's32[1]{0}', space=sflag, size = 0x4, scoped, tag = 'scoped memory for tpu_custom_call.1']
    #allocation4 [shape = 's32[1]{0}', space=sflag, size = 0x4, scoped, tag = 'scoped memory for tpu_custom_call.1']
    #allocation5 [shape = 'u8[16384]{0}', space=vmem, size = 0x4000, scoped, tag = 'input window, operand 1, single buffered']
    #allocation6 [shape = 's32[1]{0}', space=sflag, size = 0x4, scoped, tag = 'scoped memory for tpu_custom_call.1']
    #allocation7 [shape = 'u8[512]{0}', space=vmem, size = 0x400, scoped, tag = 'input window, operand 2, single buffered']
    #allocation8 [shape = 'u8[32768]{0}', space=vmem, size = 0x8000, scoped, tag = 'input window, operand 3, single buffered']
    #allocation9 [shape = 's32[1]{0}', space=sflag, size = 0x4, scoped, tag = 'scoped memory for tpu_custom_call.1']
    #allocation10 [shape = 'u8[512]{0}', space=vmem, size = 0x400, scoped, tag = 'input window, operand 4, single buffered']
    #allocation11 [shape = 'u8[262144]{0}', space=vmem, size = 0x40000, scoped, tag = 'input window, operand 5, single buffered']
    #allocation12 [shape = 's32[1]{0}', space=sflag, size = 0x4, scoped, tag = 'scoped memory for tpu_custom_call.1']
    #allocation13 [shape = 'u8[2048]{0}', space=vmem, size = 0x800, scoped, tag = 'input window, operand 6, single buffered']
    #allocation14 [shape = 'u8[2097152]{0}', space=vmem, size = 0x200000, scoped, tag = 'input window, operand 7, single buffered']
    #allocation15 [shape = 's32[1]{0}', space=sflag, size = 0x4, scoped, tag = 'scoped memory for tpu_custom_call.1']
    #allocation16 [shape = 'u8[4096]{0}', space=vmem, size = 0x1000, scoped, tag = 'input window, operand 8, single buffered']
    #allocation17 [shape = 'u8[262144]{0}', space=vmem, size = 0x40000, scoped, tag = 'input window, operand 9, single buffered']
    #allocation18 [shape = 's32[1]{0}', space=sflag, size = 0x4, scoped, tag = 'scoped memory for tpu_custom_call.1']
    #allocation19 [shape = 'u8[512]{0}', space=vmem, size = 0x400, scoped, tag = 'input window, operand 10, single buffered']
    #allocation20 [shape = 'u8[4096]{0}', space=vmem, size = 0x1000, scoped, tag = 'output window, operand 0, single buffered']
    %16 = vsyncpa [#allocation3], 0
    %17 = vsyncpa [#allocation6], 0
    %18 = vsyncpa [#allocation9], 0
    %19 = vsyncpa [#allocation12], 0
    %20 = vsyncpa [#allocation15], 0
    %21 = vsyncpa [#allocation18], 0
    %22 = vsyncpa [#allocation4], 0
    // Predicated region
    $region2: #{tpu_custom_call.1} parent=1 // pred_check
      _
    $region3: #{tpu_custom_call.1} parent=1 // pred_check_branch
      %24 = sbr.rel (0) target = $region5
    $region4: #{tpu_custom_call.1} parent=1 // pred_region
      %26 = vsyncadd [#allocation3], 0
      %s28 = sshll.u32 %s0, 4
      %s29 = int_to_ptr.hbm [resolvable:$true] %s28
      %s30 = sshll.u32 [#allocation2], 4
      %s31 = int_to_ptr.vmem [resolvable:$true] %s30
      %33 = dma.hbm_to_vmem [thread:$0]  %s29, 128, %s31, [#allocation3]
    $region5: #{tpu_custom_call.1} parent=1 // pred_fallthru
      _
    // Predicated region
    $region6: #{tpu_custom_call.1} parent=1 // pred_check
      _
    $region7: #{tpu_custom_call.1} parent=1 // pred_check_branch
      %35 = sbr.rel (0) target = $region9
    $region8: #{tpu_custom_call.1} parent=1 // pred_region
      %37 = vsyncadd [#allocation6], 0
      %s38 = sshll.u32 %s1, 4
      %s39 = int_to_ptr.hbm [resolvable:$true] %s38
      %s40 = sshll.u32 [#allocation5], 4
      %s41 = int_to_ptr.vmem [resolvable:$true] %s40
      %46 = dma.hbm_to_vmem [thread:$0]  %s39, 512, %s41, [#allocation6], 128, 128, 8
    $region9: #{tpu_custom_call.1} parent=1 // pred_fallthru
      _
    // Predicated region
    $region10: #{tpu_custom_call.1} parent=1 // pred_check
      _
    $region11: #{tpu_custom_call.1} parent=1 // pred_check_branch
      %48 = sbr.rel (0) target = $region13
    $region12: #{tpu_custom_call.1} parent=1 // pred_region
      %50 = vsyncadd [#allocation6], 0
      %s52 = sshll.u32 %s2, 4
      %s53 = int_to_ptr.hbm [resolvable:$true] %s52
      %s54 = sshll.u32 [#allocation7], 4
      %s55 = int_to_ptr.vmem [resolvable:$true] %s54
      %57 = dma.hbm_to_vmem [thread:$0]  %s53, 16, %s55, [#allocation6]
    $region13: #{tpu_custom_call.1} parent=1 // pred_fallthru
      _
    // Predicated region
    $region14: #{tpu_custom_call.1} parent=1 // pred_check
      _
    $region15: #{tpu_custom_call.1} parent=1 // pred_check_branch
      %59 = sbr.rel (0) target = $region17
    $region16: #{tpu_custom_call.1} parent=1 // pred_region
      %61 = vsyncadd [#allocation9], 0
      %s62 = sshll.u32 %s3, 4
      %s63 = int_to_ptr.hbm [resolvable:$true] %s62
      %s64 = sshll.u32 [#allocation8], 4
      %s65 = int_to_ptr.vmem [resolvable:$true] %s64
      %70 = dma.hbm_to_vmem [thread:$0]  %s63, 1024, %s65, [#allocation9], 128, 128, 8
    $region17: #{tpu_custom_call.1} parent=1 // pred_fallthru
      _
    // Predicated region
    $region18: #{tpu_custom_call.1} parent=1 // pred_check
      _
    $region19: #{tpu_custom_call.1} parent=1 // pred_check_branch
      %72 = sbr.rel (0) target = $region21
    $region20: #{tpu_custom_call.1} parent=1 // pred_region
      %74 = vsyncadd [#allocation9], 0
      %s76 = sshll.u32 %s4, 4
      %s77 = int_to_ptr.hbm [resolvable:$true] %s76
      %s78 = sshll.u32 [#allocation10], 4
      %s79 = int_to_ptr.vmem [resolvable:$true] %s78
      %81 = dma.hbm_to_vmem [thread:$0]  %s77, 16, %s79, [#allocation9]
    $region21: #{tpu_custom_call.1} parent=1 // pred_fallthru
      _
    // Predicated region
    $region22: #{tpu_custom_call.1} parent=1 // pred_check
      _
    $region23: #{tpu_custom_call.1} parent=1 // pred_check_branch
      %83 = sbr.rel (0) target = $region25
    $region24: #{tpu_custom_call.1} parent=1 // pred_region
      %85 = vsyncadd [#allocation12], 0
      %s86 = sshll.u32 %s5, 4
      %s87 = int_to_ptr.hbm [resolvable:$true] %s86
      %s88 = sshll.u32 [#allocation11], 4
      %s89 = int_to_ptr.vmem [resolvable:$true] %s88
      %94 = dma.hbm_to_vmem [thread:$0]  %s87, 8192, %s89, [#allocation12], 512, 512, 32
    $region25: #{tpu_custom_call.1} parent=1 // pred_fallthru
      _
    // Predicated region
    $region26: #{tpu_custom_call.1} parent=1 // pred_check
      _
    $region27: #{tpu_custom_call.1} parent=1 // pred_check_branch
      %96 = sbr.rel (0) target = $region29
    $region28: #{tpu_custom_call.1} parent=1 // pred_region
      %98 = vsyncadd [#allocation12], 0
      %s100 = sshll.u32 %s6, 4
      %s101 = int_to_ptr.hbm [resolvable:$true] %s100
      %s102 = sshll.u32 [#allocation13], 4
      %s103 = int_to_ptr.vmem [resolvable:$true] %s102
      %105 = dma.hbm_to_vmem [thread:$0]  %s101, 64, %s103, [#allocation12]
    $region29: #{tpu_custom_call.1} parent=1 // pred_fallthru
      _
    // Predicated region
    $region30: #{tpu_custom_call.1} parent=1 // pred_check
      _
    $region31: #{tpu_custom_call.1} parent=1 // pred_check_branch
      %107 = sbr.rel (0) target = $region33
    $region32: #{tpu_custom_call.1} parent=1 // pred_region
      %109 = vsyncadd [#allocation15], 0
      %s110 = sshll.u32 %s7, 4
      %s111 = int_to_ptr.hbm [resolvable:$true] %s110
      %s112 = sshll.u32 [#allocation14], 4
      %s113 = int_to_ptr.vmem [resolvable:$true] %s112
      %118 = dma.hbm_to_vmem [thread:$0]  %s111, 65536, %s113, [#allocation15], 1024, 1024, 64
    $region33: #{tpu_custom_call.1} parent=1 // pred_fallthru
      _
    // Predicated region
    $region34: #{tpu_custom_call.1} parent=1 // pred_check
      _
    $region35: #{tpu_custom_call.1} parent=1 // pred_check_branch
      %120 = sbr.rel (0) target = $region37
    $region36: #{tpu_custom_call.1} parent=1 // pred_region
      %122 = vsyncadd [#allocation15], 0
      %s124 = sshll.u32 %s8, 4
      %s125 = int_to_ptr.hbm [resolvable:$true] %s124
      %s126 = sshll.u32 [#allocation16], 4
      %s127 = int_to_ptr.vmem [resolvable:$true] %s126
      %129 = dma.hbm_to_vmem [thread:$0]  %s125, 128, %s127, [#allocation15]
    $region37: #{tpu_custom_call.1} parent=1 // pred_fallthru
      _
    // Predicated region
    $region38: #{tpu_custom_call.1} parent=1 // pred_check
      _
    $region39: #{tpu_custom_call.1} parent=1 // pred_check_branch
      %131 = sbr.rel (0) target = $region41
    $region40: #{tpu_custom_call.1} parent=1 // pred_region
      %133 = vsyncadd [#allocation18], 0
      %s134 = sshll.u32 %s9, 4
      %s135 = int_to_ptr.hbm [resolvable:$true] %s134
      %s136 = sshll.u32 [#allocation17], 4
      %s137 = int_to_ptr.vmem [resolvable:$true] %s136
      %142 = dma.hbm_to_vmem [thread:$0]  %s135, 8192, %s137, [#allocation18], 64, 64, 4
    $region41: #{tpu_custom_call.1} parent=1 // pred_fallthru
      _
    // Predicated region
    $region42: #{tpu_custom_call.1} parent=1 // pred_check
      _
    $region43: #{tpu_custom_call.1} parent=1 // pred_check_branch
      %144 = sbr.rel (0) target = $region45
    $region44: #{tpu_custom_call.1} parent=1 // pred_region
      %146 = vsyncadd [#allocation18], 0
      %s148 = sshll.u32 %s10, 4
      %s149 = int_to_ptr.hbm [resolvable:$true] %s148
      %s150 = sshll.u32 [#allocation19], 4
      %s151 = int_to_ptr.vmem [resolvable:$true] %s150
      %153 = dma.hbm_to_vmem [thread:$0]  %s149, 16, %s151, [#allocation18]
    $region45: #{tpu_custom_call.1} parent=1 // pred_fallthru
      _
    // Predicated region
    $region46: #{tpu_custom_call.1} parent=1 // pred_check
      _
    $region47: #{tpu_custom_call.1} parent=1 // pred_check_branch
      %155 = sbr.rel (0) target = $region49
    $region48: #{tpu_custom_call.1} parent=1 // pred_region
      %157 = dma.done [#allocation3], 128
    $region49: #{tpu_custom_call.1} parent=1 // pred_fallthru
      _
    // Predicated region
    $region50: #{tpu_custom_call.1} parent=1 // pred_check
      _
    $region51: #{tpu_custom_call.1} parent=1 // pred_check_branch
      %159 = sbr.rel (0) target = $region53
    $region52: #{tpu_custom_call.1} parent=1 // pred_region
      %161 = dma.done [#allocation6], 512
    $region53: #{tpu_custom_call.1} parent=1 // pred_fallthru
      _
    // Predicated region
    $region54: #{tpu_custom_call.1} parent=1 // pred_check
      _
    $region55: #{tpu_custom_call.1} parent=1 // pred_check_branch
      %163 = sbr.rel (0) target = $region57
    $region56: #{tpu_custom_call.1} parent=1 // pred_region
      %165 = dma.done [#allocation6], 16
    $region57: #{tpu_custom_call.1} parent=1 // pred_fallthru
      _
    // Predicated region
    $region58: #{tpu_custom_call.1} parent=1 // pred_check
      _
    $region59: #{tpu_custom_call.1} parent=1 // pred_check_branch
      %167 = sbr.rel (0) target = $region61
    $region60: #{tpu_custom_call.1} parent=1 // pred_region
      %169 = dma.done [#allocation9], 1024
    $region61: #{tpu_custom_call.1} parent=1 // pred_fallthru
      _
    // Predicated region
    $region62: #{tpu_custom_call.1} parent=1 // pred_check
      _
    $region63: #{tpu_custom_call.1} parent=1 // pred_check_branch
      %171 = sbr.rel (0) target = $region65
    $region64: #{tpu_custom_call.1} parent=1 // pred_region
      %173 = dma.done [#allocation9], 16
    $region65: #{tpu_custom_call.1} parent=1 // pred_fallthru
      _
    // Predicated region
    $region66: #{tpu_custom_call.1} parent=1 // pred_check
      _
    $region67: #{tpu_custom_call.1} parent=1 // pred_check_branch
      %175 = sbr.rel (0) target = $region69
    $region68: #{tpu_custom_call.1} parent=1 // pred_region
      %177 = dma.done [#allocation12], 8192
    $region69: #{tpu_custom_call.1} parent=1 // pred_fallthru
      _
    // Predicated region
    $region70: #{tpu_custom_call.1} parent=1 // pred_check
      _
    $region71: #{tpu_custom_call.1} parent=1 // pred_check_branch
      %179 = sbr.rel (0) target = $region73
    $region72: #{tpu_custom_call.1} parent=1 // pred_region
      %181 = dma.done [#allocation12], 64
    $region73: #{tpu_custom_call.1} parent=1 // pred_fallthru
      _
    // Predicated region
    $region74: #{tpu_custom_call.1} parent=1 // pred_check
      _
    $region75: #{tpu_custom_call.1} parent=1 // pred_check_branch
      %183 = sbr.rel (0) target = $region77
    $region76: #{tpu_custom_call.1} parent=1 // pred_region
      %185 = dma.done [#allocation15], 65536
    $region77: #{tpu_custom_call.1} parent=1 // pred_fallthru
      _
    // Predicated region
    $region78: #{tpu_custom_call.1} parent=1 // pred_check
      _
    $region79: #{tpu_custom_call.1} parent=1 // pred_check_branch
      %187 = sbr.rel (0) target = $region81
    $region80: #{tpu_custom_call.1} parent=1 // pred_region
      %189 = dma.done [#allocation15], 128
    $region81: #{tpu_custom_call.1} parent=1 // pred_fallthru
      _
    // Predicated region
    $region82: #{tpu_custom_call.1} parent=1 // pred_check
      _
    $region83: #{tpu_custom_call.1} parent=1 // pred_check_branch
      %191 = sbr.rel (0) target = $region85
    $region84: #{tpu_custom_call.1} parent=1 // pred_region
      %193 = dma.done [#allocation18], 8192
    $region85: #{tpu_custom_call.1} parent=1 // pred_fallthru
      _
    // Predicated region
    $region86: #{tpu_custom_call.1} parent=1 // pred_check
      _
    $region87: #{tpu_custom_call.1} parent=1 // pred_check_branch
      %195 = sbr.rel (0) target = $region89
    $region88: #{tpu_custom_call.1} parent=1 // pred_region
      %197 = dma.done [#allocation18], 16
    $region89: #{tpu_custom_call.1} parent=1 // pred_fallthru
      _
    %v198 = vld [vmem:[#allocation2] sm:$0xff]
    %v199 = vld [vmem:[#allocation5] sm:$0xff]
    %v200 = vld [vmem:[#allocation5 + $0x8] sm:$0xff]
    %v201 = vld [vmem:[#allocation5 + $0x10] sm:$0xff]
    %v202 = vld [vmem:[#allocation5 + $0x18] sm:$0xff]
    %v203 = vld [vmem:[#allocation7] sm:$0x1]
    %v205 = vperm.slane %v203, 0
    %vm207 = vcmask 261120
    %v209 = vsel %vm207, %v198, 0
    %211 = vmatpush.msra.mxu0 0.0
    %212 = vmatpush.msra.mxu0 0.0
    %213 = vmatpush.msra.mxu0 0.0
    %214 = vmatpush.msra.mxu0 0.0
    %215 = vmatpush.msra.mxu0 0.0
    %216 = vmatpush.msra.mxu0 0.0
    %217 = vmatpush.msra.mxu0 0.0
    %218 = vmatpush.msra.mxu0 0.0
    %219 = vmatpush.msra.mxu0 0.0
    %220 = vmatpush.msra.mxu0 0.0
    %221 = vmatpush.msra.mxu0 0.0
    %222 = vmatpush.msra.mxu0 0.0
    %223 = vmatpush.msra.mxu0 %v202
    %224 = vmatpush.msra.mxu0 %v201
    %225 = vmatpush.msra.mxu0 %v200
    %226 = vmatpush.msra.mxu0 %v199
    %227 = vmatmul.f32.gmra.mxu0 %v209
    %v228 = vpop.f32.mrf.mxu0
    %v229 = vadd.f32 %v205, %v228
    %230 = vdwg.mxu0
    %v231 = vmax.f32 %v229, 0.0
    %v232 = vld [vmem:[#allocation8] sm:$0xff]
    %v233 = vld [vmem:[#allocation8 + $0x8] sm:$0xff]
    %v234 = vld [vmem:[#allocation8 + $0x10] sm:$0xff]
    %v235 = vld [vmem:[#allocation8 + $0x18] sm:$0xff]
    %v236 = vld [vmem:[#allocation8 + $0x20] sm:$0xff]
    %v237 = vld [vmem:[#allocation8 + $0x28] sm:$0xff]
    %v238 = vld [vmem:[#allocation8 + $0x30] sm:$0xff]
    %v239 = vld [vmem:[#allocation8 + $0x38] sm:$0xff]
    %v240 = vld [vmem:[#allocation10] sm:$0x1]
    %v242 = vperm.slane %v240, 0
    %vm244 = vcmask 523264
    %v246 = vsel %vm244, %v231, 0
    %248 = vmatpush.msra.mxu0 0.0
    %249 = vmatpush.msra.mxu0 0.0
    %250 = vmatpush.msra.mxu0 0.0
    %251 = vmatpush.msra.mxu0 0.0
    %252 = vmatpush.msra.mxu0 0.0
    %253 = vmatpush.msra.mxu0 0.0
    %254 = vmatpush.msra.mxu0 0.0
    %255 = vmatpush.msra.mxu0 0.0
    %256 = vmatpush.msra.mxu0 %v239
    %257 = vmatpush.msra.mxu0 %v238
    %258 = vmatpush.msra.mxu0 %v237
    %259 = vmatpush.msra.mxu0 %v236
    %260 = vmatpush.msra.mxu0 %v235
    %261 = vmatpush.msra.mxu0 %v234
    %262 = vmatpush.msra.mxu0 %v233
    %263 = vmatpush.msra.mxu0 %v232
    %264 = vmatmul.f32.gmra.mxu0 %v246
    %v265 = vpop.f32.mrf.mxu0
    %v266 = vadd.f32 %v242, %v265
    %267 = vdwg.mxu0
    %v268 = vmax.f32 %v266, 0.0
    %v269 = vld [vmem:[#allocation11] sm:$0xff]
    %v270 = vld [vmem:[#allocation11 + $0x8] sm:$0xff]
    %v271 = vld [vmem:[#allocation11 + $0x10] sm:$0xff]
    %v272 = vld [vmem:[#allocation11 + $0x18] sm:$0xff]
    %v273 = vld [vmem:[#allocation11 + $0x20] sm:$0xff]
    %v274 = vld [vmem:[#allocation11 + $0x28] sm:$0xff]
    %v275 = vld [vmem:[#allocation11 + $0x30] sm:$0xff]
    %v276 = vld [vmem:[#allocation11 + $0x38] sm:$0xff]
    %v277 = vld [vmem:[#allocation11 + $0x40] sm:$0xff]
    %v278 = vld [vmem:[#allocation11 + $0x48] sm:$0xff]
    %v279 = vld [vmem:[#allocation11 + $0x50] sm:$0xff]
    %v280 = vld [vmem:[#allocation11 + $0x58] sm:$0xff]
    %v281 = vld [vmem:[#allocation11 + $0x60] sm:$0xff]
    %v282 = vld [vmem:[#allocation11 + $0x68] sm:$0xff]
    %v283 = vld [vmem:[#allocation11 + $0x70] sm:$0xff]
    %v284 = vld [vmem:[#allocation11 + $0x78] sm:$0xff]
    %v285 = vld [vmem:[#allocation11 + $0x80] sm:$0xff]
    %v286 = vld [vmem:[#allocation11 + $0x88] sm:$0xff]
    %v287 = vld [vmem:[#allocation11 + $0x90] sm:$0xff]
    %v288 = vld [vmem:[#allocation11 + $0x98] sm:$0xff]
    %v289 = vld [vmem:[#allocation11 + $0xa0] sm:$0xff]
    %v290 = vld [vmem:[#allocation11 + $0xa8] sm:$0xff]
    %v291 = vld [vmem:[#allocation11 + $0xb0] sm:$0xff]
    %v292 = vld [vmem:[#allocation11 + $0xb8] sm:$0xff]
    %v293 = vld [vmem:[#allocation11 + $0xc0] sm:$0xff]
    %v294 = vld [vmem:[#allocation11 + $0xc8] sm:$0xff]
    %v295 = vld [vmem:[#allocation11 + $0xd0] sm:$0xff]
    %v296 = vld [vmem:[#allocation11 + $0xd8] sm:$0xff]
    %v297 = vld [vmem:[#allocation11 + $0xe0] sm:$0xff]
    %v298 = vld [vmem:[#allocation11 + $0xe8] sm:$0xff]
    %v299 = vld [vmem:[#allocation11 + $0xf0] sm:$0xff]
    %v300 = vld [vmem:[#allocation11 + $0xf8] sm:$0xff]
    %v301 = vld [vmem:[#allocation11 + $0x100] sm:$0xff]
    %v302 = vld [vmem:[#allocation11 + $0x108] sm:$0xff]
    %v303 = vld [vmem:[#allocation11 + $0x110] sm:$0xff]
    %v304 = vld [vmem:[#allocation11 + $0x118] sm:$0xff]
    %v305 = vld [vmem:[#allocation11 + $0x120] sm:$0xff]
    %v306 = vld [vmem:[#allocation11 + $0x128] sm:$0xff]
    %v307 = vld [vmem:[#allocation11 + $0x130] sm:$0xff]
    %v308 = vld [vmem:[#allocation11 + $0x138] sm:$0xff]
    %v309 = vld [vmem:[#allocation11 + $0x140] sm:$0xff]
    %v310 = vld [vmem:[#allocation11 + $0x148] sm:$0xff]
    %v311 = vld [vmem:[#allocation11 + $0x150] sm:$0xff]
    %v312 = vld [vmem:[#allocation11 + $0x158] sm:$0xff]
    %v313 = vld [vmem:[#allocation11 + $0x160] sm:$0xff]
    %v314 = vld [vmem:[#allocation11 + $0x168] sm:$0xff]
    %v315 = vld [vmem:[#allocation11 + $0x170] sm:$0xff]
    %v316 = vld [vmem:[#allocation11 + $0x178] sm:$0xff]
    %v317 = vld [vmem:[#allocation11 + $0x180] sm:$0xff]
    %v318 = vld [vmem:[#allocation11 + $0x188] sm:$0xff]
    %v319 = vld [vmem:[#allocation11 + $0x190] sm:$0xff]
    %v320 = vld [vmem:[#allocation11 + $0x198] sm:$0xff]
    %v321 = vld [vmem:[#allocation11 + $0x1a0] sm:$0xff]
    %v322 = vld [vmem:[#allocation11 + $0x1a8] sm:$0xff]
    %v323 = vld [vmem:[#allocation11 + $0x1b0] sm:$0xff]
    %v324 = vld [vmem:[#allocation11 + $0x1b8] sm:$0xff]
    %v325 = vld [vmem:[#allocation11 + $0x1c0] sm:$0xff]
    %v326 = vld [vmem:[#allocation11 + $0x1c8] sm:$0xff]
    %v327 = vld [vmem:[#allocation11 + $0x1d0] sm:$0xff]
    %v328 = vld [vmem:[#allocation11 + $0x1d8] sm:$0xff]
    %v329 = vld [vmem:[#allocation11 + $0x1e0] sm:$0xff]
    %v330 = vld [vmem:[#allocation11 + $0x1e8] sm:$0xff]
    %v331 = vld [vmem:[#allocation11 + $0x1f0] sm:$0xff]
    %v332 = vld [vmem:[#allocation11 + $0x1f8] sm:$0xff]
    %v333 = vld [vmem:[#allocation13] sm:$0xf]
    %v335 = vperm.slane %v333, 0
    %v336 = vperm.slane %v333, 1
    %v337 = vperm.slane %v333, 2
    %v338 = vperm.slane %v333, 3
    %343 = vmatpush.msra.mxu0 %v329
    %344 = vmatpush.msra.mxu0 %v325
    %345 = vmatpush.msra.mxu0 %v321
    %346 = vmatpush.msra.mxu0 %v317
    %347 = vmatpush.msra.mxu0 %v313
    %348 = vmatpush.msra.mxu0 %v309
    %349 = vmatpush.msra.mxu0 %v305
    %350 = vmatpush.msra.mxu0 %v301
    %351 = vmatpush.msra.mxu0 %v297
    %352 = vmatpush.msra.mxu0 %v293
    %353 = vmatpush.msra.mxu0 %v289
    %354 = vmatpush.msra.mxu0 %v285
    %355 = vmatpush.msra.mxu0 %v281
    %356 = vmatpush.msra.mxu0 %v277
    %357 = vmatpush.msra.mxu0 %v273
    %358 = vmatpush.msra.mxu0 %v269
    %359 = vmatmul.f32.gmra.mxu0 %v268
    %v360 = vpop.f32.mrf.mxu0
    %v361 = vadd.f32 %v335, %v360
    %362 = vdwg.mxu0
    %363 = vmatpush.msra.mxu0 %v330
    %364 = vmatpush.msra.mxu0 %v326
    %365 = vmatpush.msra.mxu0 %v322
    %366 = vmatpush.msra.mxu0 %v318
    %367 = vmatpush.msra.mxu0 %v314
    %368 = vmatpush.msra.mxu0 %v310
    %369 = vmatpush.msra.mxu0 %v306
    %370 = vmatpush.msra.mxu0 %v302
    %371 = vmatpush.msra.mxu0 %v298
    %372 = vmatpush.msra.mxu0 %v294
    %373 = vmatpush.msra.mxu0 %v290
    %374 = vmatpush.msra.mxu0 %v286
    %375 = vmatpush.msra.mxu0 %v282
    %376 = vmatpush.msra.mxu0 %v278
    %377 = vmatpush.msra.mxu0 %v274
    %378 = vmatpush.msra.mxu0 %v270
    %379 = vmatmul.f32.gmra.mxu0 %v268
    %v380 = vpop.f32.mrf.mxu0
    %v381 = vadd.f32 %v336, %v380
    %382 = vdwg.mxu0
    %383 = vmatpush.msra.mxu0 %v331
    %384 = vmatpush.msra.mxu0 %v327
    %385 = vmatpush.msra.mxu0 %v323
    %386 = vmatpush.msra.mxu0 %v319
    %387 = vmatpush.msra.mxu0 %v315
    %388 = vmatpush.msra.mxu0 %v311
    %389 = vmatpush.msra.mxu0 %v307
    %390 = vmatpush.msra.mxu0 %v303
    %391 = vmatpush.msra.mxu0 %v299
    %392 = vmatpush.msra.mxu0 %v295
    %393 = vmatpush.msra.mxu0 %v291
    %394 = vmatpush.msra.mxu0 %v287
    %395 = vmatpush.msra.mxu0 %v283
    %396 = vmatpush.msra.mxu0 %v279
    %397 = vmatpush.msra.mxu0 %v275
    %398 = vmatpush.msra.mxu0 %v271
    %399 = vmatmul.f32.gmra.mxu0 %v268
    %v400 = vpop.f32.mrf.mxu0
    %v401 = vadd.f32 %v337, %v400
    %402 = vdwg.mxu0
    %403 = vmatpush.msra.mxu0 %v332
    %404 = vmatpush.msra.mxu0 %v328
    %405 = vmatpush.msra.mxu0 %v324
    %406 = vmatpush.msra.mxu0 %v320
    %407 = vmatpush.msra.mxu0 %v316
    %408 = vmatpush.msra.mxu0 %v312
    %409 = vmatpush.msra.mxu0 %v308
    %410 = vmatpush.msra.mxu0 %v304
    %411 = vmatpush.msra.mxu0 %v300
    %412 = vmatpush.msra.mxu0 %v296
    %413 = vmatpush.msra.mxu0 %v292
    %414 = vmatpush.msra.mxu0 %v288
    %415 = vmatpush.msra.mxu0 %v284
    %416 = vmatpush.msra.mxu0 %v280
    %417 = vmatpush.msra.mxu0 %v276
    %418 = vmatpush.msra.mxu0 %v272
    %419 = vmatmul.f32.gmra.mxu0 %v268
    %v420 = vpop.f32.mrf.mxu0
    %v421 = vadd.f32 %v338, %v420
    %422 = vdwg.mxu0
    %v423 = vmax.f32 %v361, 0.0
    %v424 = vmax.f32 %v381, 0.0
    %v425 = vmax.f32 %v401, 0.0
    %v426 = vmax.f32 %v421, 0.0
    %v427 = vld [vmem:[#allocation14] sm:$0xff]
    %v428 = vld [vmem:[#allocation14 + $0x8] sm:$0xff]
    %v429 = vld [vmem:[#allocation14 + $0x10] sm:$0xff]
    %v430 = vld [vmem:[#allocation14 + $0x18] sm:$0xff]
    %v431 = vld [vmem:[#allocation14 + $0x20] sm:$0xff]
    %v432 = vld [vmem:[#allocation14 + $0x28] sm:$0xff]
    %v433 = vld [vmem:[#allocation14 + $0x30] sm:$0xff]
    %v434 = vld [vmem:[#allocation14 + $0x38] sm:$0xff]
    %v435 = vld [vmem:[#allocation14 + $0x40] sm:$0xff]
    %v436 = vld [vmem:[#allocation14 + $0x48] sm:$0xff]
    %v437 = vld [vmem:[#allocation14 + $0x50] sm:$0xff]
    %v438 = vld [vmem:[#allocation14 + $0x58] sm:$0xff]
    %v439 = vld [vmem:[#allocation14 + $0x60] sm:$0xff]
    %v440 = vld [vmem:[#allocation14 + $0x68] sm:$0xff]
    %v441 = vld [vmem:[#allocation14 + $0x70] sm:$0xff]
    %v442 = vld [vmem:[#allocation14 + $0x78] sm:$0xff]
    %v443 = vld [vmem:[#allocation14 + $0x80] sm:$0xff]
    %v444 = vld [vmem:[#allocation14 + $0x88] sm:$0xff]
    %v445 = vld [vmem:[#allocation14 + $0x90] sm:$0xff]
    %v446 = vld [vmem:[#allocation14 + $0x98] sm:$0xff]
    %v447 = vld [vmem:[#allocation14 + $0xa0] sm:$0xff]
    %v448 = vld [vmem:[#allocation14 + $0xa8] sm:$0xff]
    %v449 = vld [vmem:[#allocation14 + $0xb0] sm:$0xff]
    %v450 = vld [vmem:[#allocation14 + $0xb8] sm:$0xff]
    %v451 = vld [vmem:[#allocation14 + $0xc0] sm:$0xff]
    %v452 = vld [vmem:[#allocation14 + $0xc8] sm:$0xff]
    %v453 = vld [vmem:[#allocation14 + $0xd0] sm:$0xff]
    %v454 = vld [vmem:[#allocation14 + $0xd8] sm:$0xff]
    %v455 = vld [vmem:[#allocation14 + $0xe0] sm:$0xff]
    %v456 = vld [vmem:[#allocation14 + $0xe8] sm:$0xff]
    %v457 = vld [vmem:[#allocation14 + $0xf0] sm:$0xff]
    %v458 = vld [vmem:[#allocation14 + $0xf8] sm:$0xff]
    %v459 = vld [vmem:[#allocation14 + $0x100] sm:$0xff]
    %v460 = vld [vmem:[#allocation14 + $0x108] sm:$0xff]
    %v461 = vld [vmem:[#allocation14 + $0x110] sm:$0xff]
    %v462 = vld [vmem:[#allocation14 + $0x118] sm:$0xff]
    %v463 = vld [vmem:[#allocation14 + $0x120] sm:$0xff]
    %v464 = vld [vmem:[#allocation14 + $0x128] sm:$0xff]
    %v465 = vld [vmem:[#allocation14 + $0x130] sm:$0xff]
    %v466 = vld [vmem:[#allocation14 + $0x138] sm:$0xff]
    %v467 = vld [vmem:[#allocation14 + $0x140] sm:$0xff]
    %v468 = vld [vmem:[#allocation14 + $0x148] sm:$0xff]
    %v469 = vld [vmem:[#allocation14 + $0x150] sm:$0xff]
    %v470 = vld [vmem:[#allocation14 + $0x158] sm:$0xff]
    %v471 = vld [vmem:[#allocation14 + $0x160] sm:$0xff]
    %v472 = vld [vmem:[#allocation14 + $0x168] sm:$0xff]
    %v473 = vld [vmem:[#allocation14 + $0x170] sm:$0xff]
    %v474 = vld [vmem:[#allocation14 + $0x178] sm:$0xff]
    %v475 = vld [vmem:[#allocation14 + $0x180] sm:$0xff]
    %v476 = vld [vmem:[#allocation14 + $0x188] sm:$0xff]
    %v477 = vld [vmem:[#allocation14 + $0x190] sm:$0xff]
    %v478 = vld [vmem:[#allocation14 + $0x198] sm:$0xff]
    %v479 = vld [vmem:[#allocation14 + $0x1a0] sm:$0xff]
    %v480 = vld [vmem:[#allocation14 + $0x1a8] sm:$0xff]
    %v481 = vld [vmem:[#allocation14 + $0x1b0] sm:$0xff]
    %v482 = vld [vmem:[#allocation14 + $0x1b8] sm:$0xff]
    %v483 = vld [vmem:[#allocation14 + $0x1c0] sm:$0xff]
    %v484 = vld [vmem:[#allocation14 + $0x1c8] sm:$0xff]
    %v485 = vld [vmem:[#allocation14 + $0x1d0] sm:$0xff]
    %v486 = vld [vmem:[#allocation14 + $0x1d8] sm:$0xff]
    %v487 = vld [vmem:[#allocation14 + $0x1e0] sm:$0xff]
    %v488 = vld [vmem:[#allocation14 + $0x1e8] sm:$0xff]
    %v489 = vld [vmem:[#allocation14 + $0x1f0] sm:$0xff]
    %v490 = vld [vmem:[#allocation14 + $0x1f8] sm:$0xff]
    %v491 = vld [vmem:[#allocation14 + $0x200] sm:$0xff]
    %v492 = vld [vmem:[#allocation14 + $0x208] sm:$0xff]
    %v493 = vld [vmem:[#allocation14 + $0x210] sm:$0xff]
    %v494 = vld [vmem:[#allocation14 + $0x218] sm:$0xff]
    %v495 = vld [vmem:[#allocation14 + $0x220] sm:$0xff]
    %v496 = vld [vmem:[#allocation14 + $0x228] sm:$0xff]
    %v497 = vld [vmem:[#allocation14 + $0x230] sm:$0xff]
    %v498 = vld [vmem:[#allocation14 + $0x238] sm:$0xff]
    %v499 = vld [vmem:[#allocation14 + $0x240] sm:$0xff]
    %v500 = vld [vmem:[#allocation14 + $0x248] sm:$0xff]
    %v501 = vld [vmem:[#allocation14 + $0x250] sm:$0xff]
    %v502 = vld [vmem:[#allocation14 + $0x258] sm:$0xff]
    %v503 = vld [vmem:[#allocation14 + $0x260] sm:$0xff]
    %v504 = vld [vmem:[#allocation14 + $0x268] sm:$0xff]
    %v505 = vld [vmem:[#allocation14 + $0x270] sm:$0xff]
    %v506 = vld [vmem:[#allocation14 + $0x278] sm:$0xff]
    %v507 = vld [vmem:[#allocation14 + $0x280] sm:$0xff]
    %v508 = vld [vmem:[#allocation14 + $0x288] sm:$0xff]
    %v509 = vld [vmem:[#allocation14 + $0x290] sm:$0xff]
    %v510 = vld [vmem:[#allocation14 + $0x298] sm:$0xff]
    %v511 = vld [vmem:[#allocation14 + $0x2a0] sm:$0xff]
    %v512 = vld [vmem:[#allocation14 + $0x2a8] sm:$0xff]
    %v513 = vld [vmem:[#allocation14 + $0x2b0] sm:$0xff]
    %v514 = vld [vmem:[#allocation14 + $0x2b8] sm:$0xff]
    %v515 = vld [vmem:[#allocation14 + $0x2c0] sm:$0xff]
    %v516 = vld [vmem:[#allocation14 + $0x2c8] sm:$0xff]
    %v517 = vld [vmem:[#allocation14 + $0x2d0] sm:$0xff]
    %v518 = vld [vmem:[#allocation14 + $0x2d8] sm:$0xff]
    %v519 = vld [vmem:[#allocation14 + $0x2e0] sm:$0xff]
    %v520 = vld [vmem:[#allocation14 + $0x2e8] sm:$0xff]
    %v521 = vld [vmem:[#allocation14 + $0x2f0] sm:$0xff]
    %v522 = vld [vmem:[#allocation14 + $0x2f8] sm:$0xff]
    %v523 = vld [vmem:[#allocation14 + $0x300] sm:$0xff]
    %v524 = vld [vmem:[#allocation14 + $0x308] sm:$0xff]
    %v525 = vld [vmem:[#allocation14 + $0x310] sm:$0xff]
    %v526 = vld [vmem:[#allocation14 + $0x318] sm:$0xff]
    %v527 = vld [vmem:[#allocation14 + $0x320] sm:$0xff]
    %v528 = vld [vmem:[#allocation14 + $0x328] sm:$0xff]
    %v529 = vld [vmem:[#allocation14 + $0x330] sm:$0xff]
    %v530 = vld [vmem:[#allocation14 + $0x338] sm:$0xff]
    %v531 = vld [vmem:[#allocation14 + $0x340] sm:$0xff]
    %v532 = vld [vmem:[#allocation14 + $0x348] sm:$0xff]
    %v533 = vld [vmem:[#allocation14 + $0x350] sm:$0xff]
    %v534 = vld [vmem:[#allocation14 + $0x358] sm:$0xff]
    %v535 = vld [vmem:[#allocation14 + $0x360] sm:$0xff]
    %v536 = vld [vmem:[#allocation14 + $0x368] sm:$0xff]
    %v537 = vld [vmem:[#allocation14 + $0x370] sm:$0xff]
    %v538 = vld [vmem:[#allocation14 + $0x378] sm:$0xff]
    %v539 = vld [vmem:[#allocation14 + $0x380] sm:$0xff]
    %v540 = vld [vmem:[#allocation14 + $0x388] sm:$0xff]
    %v541 = vld [vmem:[#allocation14 + $0x390] sm:$0xff]
    %v542 = vld [vmem:[#allocation14 + $0x398] sm:$0xff]
    %v543 = vld [vmem:[#allocation14 + $0x3a0] sm:$0xff]
    %v544 = vld [vmem:[#allocation14 + $0x3a8] sm:$0xff]
    %v545 = vld [vmem:[#allocation14 + $0x3b0] sm:$0xff]
    %v546 = vld [vmem:[#allocation14 + $0x3b8] sm:$0xff]
    %v547 = vld [vmem:[#allocation14 + $0x3c0] sm:$0xff]
    %v548 = vld [vmem:[#allocation14 + $0x3c8] sm:$0xff]
    %v549 = vld [vmem:[#allocation14 + $0x3d0] sm:$0xff]
    %v550 = vld [vmem:[#allocation14 + $0x3d8] sm:$0xff]
    %v551 = vld [vmem:[#allocation14 + $0x3e0] sm:$0xff]
    %v552 = vld [vmem:[#allocation14 + $0x3e8] sm:$0xff]
    %v553 = vld [vmem:[#allocation14 + $0x3f0] sm:$0xff]
    %v554 = vld [vmem:[#allocation14 + $0x3f8] sm:$0xff]
    %v555 = vld [vmem:[#allocation14 + $0x400] sm:$0xff]
    %v556 = vld [vmem:[#allocation14 + $0x408] sm:$0xff]
    %v557 = vld [vmem:[#allocation14 + $0x410] sm:$0xff]
    %v558 = vld [vmem:[#allocation14 + $0x418] sm:$0xff]
    %v559 = vld [vmem:[#allocation14 + $0x420] sm:$0xff]
    %v560 = vld [vmem:[#allocation14 + $0x428] sm:$0xff]
    %v561 = vld [vmem:[#allocation14 + $0x430] sm:$0xff]
    %v562 = vld [vmem:[#allocation14 + $0x438] sm:$0xff]
    %v563 = vld [vmem:[#allocation14 + $0x440] sm:$0xff]
    %v564 = vld [vmem:[#allocation14 + $0x448] sm:$0xff]
    %v565 = vld [vmem:[#allocation14 + $0x450] sm:$0xff]
    %v566 = vld [vmem:[#allocation14 + $0x458] sm:$0xff]
    %v567 = vld [vmem:[#allocation14 + $0x460] sm:$0xff]
    %v568 = vld [vmem:[#allocation14 + $0x468] sm:$0xff]
    %v569 = vld [vmem:[#allocation14 + $0x470] sm:$0xff]
    %v570 = vld [vmem:[#allocation14 + $0x478] sm:$0xff]
    %v571 = vld [vmem:[#allocation14 + $0x480] sm:$0xff]
    %v572 = vld [vmem:[#allocation14 + $0x488] sm:$0xff]
    %v573 = vld [vmem:[#allocation14 + $0x490] sm:$0xff]
    %v574 = vld [vmem:[#allocation14 + $0x498] sm:$0xff]
    %v575 = vld [vmem:[#allocation14 + $0x4a0] sm:$0xff]
    %v576 = vld [vmem:[#allocation14 + $0x4a8] sm:$0xff]
    %v577 = vld [vmem:[#allocation14 + $0x4b0] sm:$0xff]
    %v578 = vld [vmem:[#allocation14 + $0x4b8] sm:$0xff]
    %v579 = vld [vmem:[#allocation14 + $0x4c0] sm:$0xff]
    %v580 = vld [vmem:[#allocation14 + $0x4c8] sm:$0xff]
    %v581 = vld [vmem:[#allocation14 + $0x4d0] sm:$0xff]
    %v582 = vld [vmem:[#allocation14 + $0x4d8] sm:$0xff]
    %v583 = vld [vmem:[#allocation14 + $0x4e0] sm:$0xff]
    %v584 = vld [vmem:[#allocation14 + $0x4e8] sm:$0xff]
    %v585 = vld [vmem:[#allocation14 + $0x4f0] sm:$0xff]
    %v586 = vld [vmem:[#allocation14 + $0x4f8] sm:$0xff]
    %v587 = vld [vmem:[#allocation14 + $0x500] sm:$0xff]
    %v588 = vld [vmem:[#allocation14 + $0x508] sm:$0xff]
    %v589 = vld [vmem:[#allocation14 + $0x510] sm:$0xff]
    %v590 = vld [vmem:[#allocation14 + $0x518] sm:$0xff]
    %v591 = vld [vmem:[#allocation14 + $0x520] sm:$0xff]
    %v592 = vld [vmem:[#allocation14 + $0x528] sm:$0xff]
    %v593 = vld [vmem:[#allocation14 + $0x530] sm:$0xff]
    %v594 = vld [vmem:[#allocation14 + $0x538] sm:$0xff]
    %v595 = vld [vmem:[#allocation14 + $0x540] sm:$0xff]
    %v596 = vld [vmem:[#allocation14 + $0x548] sm:$0xff]
    %v597 = vld [vmem:[#allocation14 + $0x550] sm:$0xff]
    %v598 = vld [vmem:[#allocation14 + $0x558] sm:$0xff]
    %v599 = vld [vmem:[#allocation14 + $0x560] sm:$0xff]
    %v600 = vld [vmem:[#allocation14 + $0x568] sm:$0xff]
    %v601 = vld [vmem:[#allocation14 + $0x570] sm:$0xff]
    %v602 = vld [vmem:[#allocation14 + $0x578] sm:$0xff]
    %v603 = vld [vmem:[#allocation14 + $0x580] sm:$0xff]
    %v604 = vld [vmem:[#allocation14 + $0x588] sm:$0xff]
    %v605 = vld [vmem:[#allocation14 + $0x590] sm:$0xff]
    %v606 = vld [vmem:[#allocation14 + $0x598] sm:$0xff]
    %v607 = vld [vmem:[#allocation14 + $0x5a0] sm:$0xff]
    %v608 = vld [vmem:[#allocation14 + $0x5a8] sm:$0xff]
    %v609 = vld [vmem:[#allocation14 + $0x5b0] sm:$0xff]
    %v610 = vld [vmem:[#allocation14 + $0x5b8] sm:$0xff]
    %v611 = vld [vmem:[#allocation14 + $0x5c0] sm:$0xff]
    %v612 = vld [vmem:[#allocation14 + $0x5c8] sm:$0xff]
    %v613 = vld [vmem:[#allocation14 + $0x5d0] sm:$0xff]
    %v614 = vld [vmem:[#allocation14 + $0x5d8] sm:$0xff]
    %v615 = vld [vmem:[#allocation14 + $0x5e0] sm:$0xff]
    %v616 = vld [vmem:[#allocation14 + $0x5e8] sm:$0xff]
    %v617 = vld [vmem:[#allocation14 + $0x5f0] sm:$0xff]
    %v618 = vld [vmem:[#allocation14 + $0x5f8] sm:$0xff]
    %v619 = vld [vmem:[#allocation14 + $0x600] sm:$0xff]
    %v620 = vld [vmem:[#allocation14 + $0x608] sm:$0xff]
    %v621 = vld [vmem:[#allocation14 + $0x610] sm:$0xff]
    %v622 = vld [vmem:[#allocation14 + $0x618] sm:$0xff]
    %v623 = vld [vmem:[#allocation14 + $0x620] sm:$0xff]
    %v624 = vld [vmem:[#allocation14 + $0x628] sm:$0xff]
    %v625 = vld [vmem:[#allocation14 + $0x630] sm:$0xff]
    %v626 = vld [vmem:[#allocation14 + $0x638] sm:$0xff]
    %v627 = vld [vmem:[#allocation14 + $0x640] sm:$0xff]
    %v628 = vld [vmem:[#allocation14 + $0x648] sm:$0xff]
    %v629 = vld [vmem:[#allocation14 + $0x650] sm:$0xff]
    %v630 = vld [vmem:[#allocation14 + $0x658] sm:$0xff]
    %v631 = vld [vmem:[#allocation14 + $0x660] sm:$0xff]
    %v632 = vld [vmem:[#allocation14 + $0x668] sm:$0xff]
    %v633 = vld [vmem:[#allocation14 + $0x670] sm:$0xff]
    %v634 = vld [vmem:[#allocation14 + $0x678] sm:$0xff]
    %v635 = vld [vmem:[#allocation14 + $0x680] sm:$0xff]
    %v636 = vld [vmem:[#allocation14 + $0x688] sm:$0xff]
    %v637 = vld [vmem:[#allocation14 + $0x690] sm:$0xff]
    %v638 = vld [vmem:[#allocation14 + $0x698] sm:$0xff]
    %v639 = vld [vmem:[#allocation14 + $0x6a0] sm:$0xff]
    %v640 = vld [vmem:[#allocation14 + $0x6a8] sm:$0xff]
    %v641 = vld [vmem:[#allocation14 + $0x6b0] sm:$0xff]
    %v642 = vld [vmem:[#allocation14 + $0x6b8] sm:$0xff]
    %v643 = vld [vmem:[#allocation14 + $0x6c0] sm:$0xff]
    %v644 = vld [vmem:[#allocation14 + $0x6c8] sm:$0xff]
    %v645 = vld [vmem:[#allocation14 + $0x6d0] sm:$0xff]
    %v646 = vld [vmem:[#allocation14 + $0x6d8] sm:$0xff]
    %v647 = vld [vmem:[#allocation14 + $0x6e0] sm:$0xff]
    %v648 = vld [vmem:[#allocation14 + $0x6e8] sm:$0xff]
    %v649 = vld [vmem:[#allocation14 + $0x6f0] sm:$0xff]
    %v650 = vld [vmem:[#allocation14 + $0x6f8] sm:$0xff]
    %v651 = vld [vmem:[#allocation14 + $0x700] sm:$0xff]
    %v652 = vld [vmem:[#allocation14 + $0x708] sm:$0xff]
    %v653 = vld [vmem:[#allocation14 + $0x710] sm:$0xff]
    %v654 = vld [vmem:[#allocation14 + $0x718] sm:$0xff]
    %v655 = vld [vmem:[#allocation14 + $0x720] sm:$0xff]
    %v656 = vld [vmem:[#allocation14 + $0x728] sm:$0xff]
    %v657 = vld [vmem:[#allocation14 + $0x730] sm:$0xff]
    %v658 = vld [vmem:[#allocation14 + $0x738] sm:$0xff]
    %v659 = vld [vmem:[#allocation14 + $0x740] sm:$0xff]
    %v660 = vld [vmem:[#allocation14 + $0x748] sm:$0xff]
    %v661 = vld [vmem:[#allocation14 + $0x750] sm:$0xff]
    %v662 = vld [vmem:[#allocation14 + $0x758] sm:$0xff]
    %v663 = vld [vmem:[#allocation14 + $0x760] sm:$0xff]
    %v664 = vld [vmem:[#allocation14 + $0x768] sm:$0xff]
    %v665 = vld [vmem:[#allocation14 + $0x770] sm:$0xff]
    %v666 = vld [vmem:[#allocation14 + $0x778] sm:$0xff]
    %v667 = vld [vmem:[#allocation14 + $0x780] sm:$0xff]
    %v668 = vld [vmem:[#allocation14 + $0x788] sm:$0xff]
    %v669 = vld [vmem:[#allocation14 + $0x790] sm:$0xff]
    %v670 = vld [vmem:[#allocation14 + $0x798] sm:$0xff]
    %v671 = vld [vmem:[#allocation14 + $0x7a0] sm:$0xff]
    %v672 = vld [vmem:[#allocation14 + $0x7a8] sm:$0xff]
    %v673 = vld [vmem:[#allocation14 + $0x7b0] sm:$0xff]
    %v674 = vld [vmem:[#allocation14 + $0x7b8] sm:$0xff]
    %v675 = vld [vmem:[#allocation14 + $0x7c0] sm:$0xff]
    %v676 = vld [vmem:[#allocation14 + $0x7c8] sm:$0xff]
    %v677 = vld [vmem:[#allocation14 + $0x7d0] sm:$0xff]
    %v678 = vld [vmem:[#allocation14 + $0x7d8] sm:$0xff]
    %v679 = vld [vmem:[#allocation14 + $0x7e0] sm:$0xff]
    %v680 = vld [vmem:[#allocation14 + $0x7e8] sm:$0xff]
    %v681 = vld [vmem:[#allocation14 + $0x7f0] sm:$0xff]
    %v682 = vld [vmem:[#allocation14 + $0x7f8] sm:$0xff]
    %v683 = vld [vmem:[#allocation14 + $0x800] sm:$0xff]
    %v684 = vld [vmem:[#allocation14 + $0x808] sm:$0xff]
    %v685 = vld [vmem:[#allocation14 + $0x810] sm:$0xff]
    %v686 = vld [vmem:[#allocation14 + $0x818] sm:$0xff]
    %v687 = vld [vmem:[#allocation14 + $0x820] sm:$0xff]
    %v688 = vld [vmem:[#allocation14 + $0x828] sm:$0xff]
    %v689 = vld [vmem:[#allocation14 + $0x830] sm:$0xff]
    %v690 = vld [vmem:[#allocation14 + $0x838] sm:$0xff]
    %v691 = vld [vmem:[#allocation14 + $0x840] sm:$0xff]
    %v692 = vld [vmem:[#allocation14 + $0x848] sm:$0xff]
    %v693 = vld [vmem:[#allocation14 + $0x850] sm:$0xff]
    %v694 = vld [vmem:[#allocation14 + $0x858] sm:$0xff]
    %v695 = vld [vmem:[#allocation14 + $0x860] sm:$0xff]
    %v696 = vld [vmem:[#allocation14 + $0x868] sm:$0xff]
    %v697 = vld [vmem:[#allocation14 + $0x870] sm:$0xff]
    %v698 = vld [vmem:[#allocation14 + $0x878] sm:$0xff]
    %v699 = vld [vmem:[#allocation14 + $0x880] sm:$0xff]
    %v700 = vld [vmem:[#allocation14 + $0x888] sm:$0xff]
    %v701 = vld [vmem:[#allocation14 + $0x890] sm:$0xff]
    %v702 = vld [vmem:[#allocation14 + $0x898] sm:$0xff]
    %v703 = vld [vmem:[#allocation14 + $0x8a0] sm:$0xff]
    %v704 = vld [vmem:[#allocation14 + $0x8a8] sm:$0xff]
    %v705 = vld [vmem:[#allocation14 + $0x8b0] sm:$0xff]
    %v706 = vld [vmem:[#allocation14 + $0x8b8] sm:$0xff]
    %v707 = vld [vmem:[#allocation14 + $0x8c0] sm:$0xff]
    %v708 = vld [vmem:[#allocation14 + $0x8c8] sm:$0xff]
    %v709 = vld [vmem:[#allocation14 + $0x8d0] sm:$0xff]
    %v710 = vld [vmem:[#allocation14 + $0x8d8] sm:$0xff]
    %v711 = vld [vmem:[#allocation14 + $0x8e0] sm:$0xff]
    %v712 = vld [vmem:[#allocation14 + $0x8e8] sm:$0xff]
    %v713 = vld [vmem:[#allocation14 + $0x8f0] sm:$0xff]
    %v714 = vld [vmem:[#allocation14 + $0x8f8] sm:$0xff]
    %v715 = vld [vmem:[#allocation14 + $0x900] sm:$0xff]
    %v716 = vld [vmem:[#allocation14 + $0x908] sm:$0xff]
    %v717 = vld [vmem:[#allocation14 + $0x910] sm:$0xff]
    %v718 = vld [vmem:[#allocation14 + $0x918] sm:$0xff]
    %v719 = vld [vmem:[#allocation14 + $0x920] sm:$0xff]
    %v720 = vld [vmem:[#allocation14 + $0x928] sm:$0xff]
    %v721 = vld [vmem:[#allocation14 + $0x930] sm:$0xff]
    %v722 = vld [vmem:[#allocation14 + $0x938] sm:$0xff]
    %v723 = vld [vmem:[#allocation14 + $0x940] sm:$0xff]
    %v724 = vld [vmem:[#allocation14 + $0x948] sm:$0xff]
    %v725 = vld [vmem:[#allocation14 + $0x950] sm:$0xff]
    %v726 = vld [vmem:[#allocation14 + $0x958] sm:$0xff]
    %v727 = vld [vmem:[#allocation14 + $0x960] sm:$0xff]
    %v728 = vld [vmem:[#allocation14 + $0x968] sm:$0xff]
    %v729 = vld [vmem:[#allocation14 + $0x970] sm:$0xff]
    %v730 = vld [vmem:[#allocation14 + $0x978] sm:$0xff]
    %v731 = vld [vmem:[#allocation14 + $0x980] sm:$0xff]
    %v732 = vld [vmem:[#allocation14 + $0x988] sm:$0xff]
    %v733 = vld [vmem:[#allocation14 + $0x990] sm:$0xff]
    %v734 = vld [vmem:[#allocation14 + $0x998] sm:$0xff]
    %v735 = vld [vmem:[#allocation14 + $0x9a0] sm:$0xff]
    %v736 = vld [vmem:[#allocation14 + $0x9a8] sm:$0xff]
    %v737 = vld [vmem:[#allocation14 + $0x9b0] sm:$0xff]
    %v738 = vld [vmem:[#allocation14 + $0x9b8] sm:$0xff]
    %v739 = vld [vmem:[#allocation14 + $0x9c0] sm:$0xff]
    %v740 = vld [vmem:[#allocation14 + $0x9c8] sm:$0xff]
    %v741 = vld [vmem:[#allocation14 + $0x9d0] sm:$0xff]
    %v742 = vld [vmem:[#allocation14 + $0x9d8] sm:$0xff]
    %v743 = vld [vmem:[#allocation14 + $0x9e0] sm:$0xff]
    %v744 = vld [vmem:[#allocation14 + $0x9e8] sm:$0xff]
    %v745 = vld [vmem:[#allocation14 + $0x9f0] sm:$0xff]
    %v746 = vld [vmem:[#allocation14 + $0x9f8] sm:$0xff]
    %v747 = vld [vmem:[#allocation14 + $0xa00] sm:$0xff]
    %v748 = vld [vmem:[#allocation14 + $0xa08] sm:$0xff]
    %v749 = vld [vmem:[#allocation14 + $0xa10] sm:$0xff]
    %v750 = vld [vmem:[#allocation14 + $0xa18] sm:$0xff]
    %v751 = vld [vmem:[#allocation14 + $0xa20] sm:$0xff]
    %v752 = vld [vmem:[#allocation14 + $0xa28] sm:$0xff]
    %v753 = vld [vmem:[#allocation14 + $0xa30] sm:$0xff]
    %v754 = vld [vmem:[#allocation14 + $0xa38] sm:$0xff]
    %v755 = vld [vmem:[#allocation14 + $0xa40] sm:$0xff]
    %v756 = vld [vmem:[#allocation14 + $0xa48] sm:$0xff]
    %v757 = vld [vmem:[#allocation14 + $0xa50] sm:$0xff]
    %v758 = vld [vmem:[#allocation14 + $0xa58] sm:$0xff]
    %v759 = vld [vmem:[#allocation14 + $0xa60] sm:$0xff]
    %v760 = vld [vmem:[#allocation14 + $0xa68] sm:$0xff]
    %v761 = vld [vmem:[#allocation14 + $0xa70] sm:$0xff]
    %v762 = vld [vmem:[#allocation14 + $0xa78] sm:$0xff]
    %v763 = vld [vmem:[#allocation14 + $0xa80] sm:$0xff]
    %v764 = vld [vmem:[#allocation14 + $0xa88] sm:$0xff]
    %v765 = vld [vmem:[#allocation14 + $0xa90] sm:$0xff]
    %v766 = vld [vmem:[#allocation14 + $0xa98] sm:$0xff]
    %v767 = vld [vmem:[#allocation14 + $0xaa0] sm:$0xff]
    %v768 = vld [vmem:[#allocation14 + $0xaa8] sm:$0xff]
    %v769 = vld [vmem:[#allocation14 + $0xab0] sm:$0xff]
    %v770 = vld [vmem:[#allocation14 + $0xab8] sm:$0xff]
    %v771 = vld [vmem:[#allocation14 + $0xac0] sm:$0xff]
    %v772 = vld [vmem:[#allocation14 + $0xac8] sm:$0xff]
    %v773 = vld [vmem:[#allocation14 + $0xad0] sm:$0xff]
    %v774 = vld [vmem:[#allocation14 + $0xad8] sm:$0xff]
    %v775 = vld [vmem:[#allocation14 + $0xae0] sm:$0xff]
    %v776 = vld [vmem:[#allocation14 + $0xae8] sm:$0xff]
    %v777 = vld [vmem:[#allocation14 + $0xaf0] sm:$0xff]
    %v778 = vld [vmem:[#allocation14 + $0xaf8] sm:$0xff]
    %v779 = vld [vmem:[#allocation14 + $0xb00] sm:$0xff]
    %v780 = vld [vmem:[#allocation14 + $0xb08] sm:$0xff]
    %v781 = vld [vmem:[#allocation14 + $0xb10] sm:$0xff]
    %v782 = vld [vmem:[#allocation14 + $0xb18] sm:$0xff]
    %v783 = vld [vmem:[#allocation14 + $0xb20] sm:$0xff]
    %v784 = vld [vmem:[#allocation14 + $0xb28] sm:$0xff]
    %v785 = vld [vmem:[#allocation14 + $0xb30] sm:$0xff]
    %v786 = vld [vmem:[#allocation14 + $0xb38] sm:$0xff]
    %v787 = vld [vmem:[#allocation14 + $0xb40] sm:$0xff]
    %v788 = vld [vmem:[#allocation14 + $0xb48] sm:$0xff]
    %v789 = vld [vmem:[#allocation14 + $0xb50] sm:$0xff]
    %v790 = vld [vmem:[#allocation14 + $0xb58] sm:$0xff]
    %v791 = vld [vmem:[#allocation14 + $0xb60] sm:$0xff]
    %v792 = vld [vmem:[#allocation14 + $0xb68] sm:$0xff]
    %v793 = vld [vmem:[#allocation14 + $0xb70] sm:$0xff]
    %v794 = vld [vmem:[#allocation14 + $0xb78] sm:$0xff]
    %v795 = vld [vmem:[#allocation14 + $0xb80] sm:$0xff]
    %v796 = vld [vmem:[#allocation14 + $0xb88] sm:$0xff]
    %v797 = vld [vmem:[#allocation14 + $0xb90] sm:$0xff]
    %v798 = vld [vmem:[#allocation14 + $0xb98] sm:$0xff]
    %v799 = vld [vmem:[#allocation14 + $0xba0] sm:$0xff]
    %v800 = vld [vmem:[#allocation14 + $0xba8] sm:$0xff]
    %v801 = vld [vmem:[#allocation14 + $0xbb0] sm:$0xff]
    %v802 = vld [vmem:[#allocation14 + $0xbb8] sm:$0xff]
    %v803 = vld [vmem:[#allocation14 + $0xbc0] sm:$0xff]
    %v804 = vld [vmem:[#allocation14 + $0xbc8] sm:$0xff]
    %v805 = vld [vmem:[#allocation14 + $0xbd0] sm:$0xff]
    %v806 = vld [vmem:[#allocation14 + $0xbd8] sm:$0xff]
    %v807 = vld [vmem:[#allocation14 + $0xbe0] sm:$0xff]
    %v808 = vld [vmem:[#allocation14 + $0xbe8] sm:$0xff]
    %v809 = vld [vmem:[#allocation14 + $0xbf0] sm:$0xff]
    %v810 = vld [vmem:[#allocation14 + $0xbf8] sm:$0xff]
    %v811 = vld [vmem:[#allocation14 + $0xc00] sm:$0xff]
    %v812 = vld [vmem:[#allocation14 + $0xc08] sm:$0xff]
    %v813 = vld [vmem:[#allocation14 + $0xc10] sm:$0xff]
    %v814 = vld [vmem:[#allocation14 + $0xc18] sm:$0xff]
    %v815 = vld [vmem:[#allocation14 + $0xc20] sm:$0xff]
    %v816 = vld [vmem:[#allocation14 + $0xc28] sm:$0xff]
    %v817 = vld [vmem:[#allocation14 + $0xc30] sm:$0xff]
    %v818 = vld [vmem:[#allocation14 + $0xc38] sm:$0xff]
    %v819 = vld [vmem:[#allocation14 + $0xc40] sm:$0xff]
    %v820 = vld [vmem:[#allocation14 + $0xc48] sm:$0xff]
    %v821 = vld [vmem:[#allocation14 + $0xc50] sm:$0xff]
    %v822 = vld [vmem:[#allocation14 + $0xc58] sm:$0xff]
    %v823 = vld [vmem:[#allocation14 + $0xc60] sm:$0xff]
    %v824 = vld [vmem:[#allocation14 + $0xc68] sm:$0xff]
    %v825 = vld [vmem:[#allocation14 + $0xc70] sm:$0xff]
    %v826 = vld [vmem:[#allocation14 + $0xc78] sm:$0xff]
    %v827 = vld [vmem:[#allocation14 + $0xc80] sm:$0xff]
    %v828 = vld [vmem:[#allocation14 + $0xc88] sm:$0xff]
    %v829 = vld [vmem:[#allocation14 + $0xc90] sm:$0xff]
    %v830 = vld [vmem:[#allocation14 + $0xc98] sm:$0xff]
    %v831 = vld [vmem:[#allocation14 + $0xca0] sm:$0xff]
    %v832 = vld [vmem:[#allocation14 + $0xca8] sm:$0xff]
    %v833 = vld [vmem:[#allocation14 + $0xcb0] sm:$0xff]
    %v834 = vld [vmem:[#allocation14 + $0xcb8] sm:$0xff]
    %v835 = vld [vmem:[#allocation14 + $0xcc0] sm:$0xff]
    %v836 = vld [vmem:[#allocation14 + $0xcc8] sm:$0xff]
    %v837 = vld [vmem:[#allocation14 + $0xcd0] sm:$0xff]
    %v838 = vld [vmem:[#allocation14 + $0xcd8] sm:$0xff]
    %v839 = vld [vmem:[#allocation14 + $0xce0] sm:$0xff]
    %v840 = vld [vmem:[#allocation14 + $0xce8] sm:$0xff]
    %v841 = vld [vmem:[#allocation14 + $0xcf0] sm:$0xff]
    %v842 = vld [vmem:[#allocation14 + $0xcf8] sm:$0xff]
    %v843 = vld [vmem:[#allocation14 + $0xd00] sm:$0xff]
    %v844 = vld [vmem:[#allocation14 + $0xd08] sm:$0xff]
    %v845 = vld [vmem:[#allocation14 + $0xd10] sm:$0xff]
    %v846 = vld [vmem:[#allocation14 + $0xd18] sm:$0xff]
    %v847 = vld [vmem:[#allocation14 + $0xd20] sm:$0xff]
    %v848 = vld [vmem:[#allocation14 + $0xd28] sm:$0xff]
    %v849 = vld [vmem:[#allocation14 + $0xd30] sm:$0xff]
    %v850 = vld [vmem:[#allocation14 + $0xd38] sm:$0xff]
    %v851 = vld [vmem:[#allocation14 + $0xd40] sm:$0xff]
    %v852 = vld [vmem:[#allocation14 + $0xd48] sm:$0xff]
    %v853 = vld [vmem:[#allocation14 + $0xd50] sm:$0xff]
    %v854 = vld [vmem:[#allocation14 + $0xd58] sm:$0xff]
    %v855 = vld [vmem:[#allocation14 + $0xd60] sm:$0xff]
    %v856 = vld [vmem:[#allocation14 + $0xd68] sm:$0xff]
    %v857 = vld [vmem:[#allocation14 + $0xd70] sm:$0xff]
    %v858 = vld [vmem:[#allocation14 + $0xd78] sm:$0xff]
    %v859 = vld [vmem:[#allocation14 + $0xd80] sm:$0xff]
    %v860 = vld [vmem:[#allocation14 + $0xd88] sm:$0xff]
    %v861 = vld [vmem:[#allocation14 + $0xd90] sm:$0xff]
    %v862 = vld [vmem:[#allocation14 + $0xd98] sm:$0xff]
    %v863 = vld [vmem:[#allocation14 + $0xda0] sm:$0xff]
    %v864 = vld [vmem:[#allocation14 + $0xda8] sm:$0xff]
    %v865 = vld [vmem:[#allocation14 + $0xdb0] sm:$0xff]
    %v866 = vld [vmem:[#allocation14 + $0xdb8] sm:$0xff]
    %v867 = vld [vmem:[#allocation14 + $0xdc0] sm:$0xff]
    %v868 = vld [vmem:[#allocation14 + $0xdc8] sm:$0xff]
    %v869 = vld [vmem:[#allocation14 + $0xdd0] sm:$0xff]
    %v870 = vld [vmem:[#allocation14 + $0xdd8] sm:$0xff]
    %v871 = vld [vmem:[#allocation14 + $0xde0] sm:$0xff]
    %v872 = vld [vmem:[#allocation14 + $0xde8] sm:$0xff]
    %v873 = vld [vmem:[#allocation14 + $0xdf0] sm:$0xff]
    %v874 = vld [vmem:[#allocation14 + $0xdf8] sm:$0xff]
    %v875 = vld [vmem:[#allocation14 + $0xe00] sm:$0xff]
    %v876 = vld [vmem:[#allocation14 + $0xe08] sm:$0xff]
    %v877 = vld [vmem:[#allocation14 + $0xe10] sm:$0xff]
    %v878 = vld [vmem:[#allocation14 + $0xe18] sm:$0xff]
    %v879 = vld [vmem:[#allocation14 + $0xe20] sm:$0xff]
    %v880 = vld [vmem:[#allocation14 + $0xe28] sm:$0xff]
    %v881 = vld [vmem:[#allocation14 + $0xe30] sm:$0xff]
    %v882 = vld [vmem:[#allocation14 + $0xe38] sm:$0xff]
    %v883 = vld [vmem:[#allocation14 + $0xe40] sm:$0xff]
    %v884 = vld [vmem:[#allocation14 + $0xe48] sm:$0xff]
    %v885 = vld [vmem:[#allocation14 + $0xe50] sm:$0xff]
    %v886 = vld [vmem:[#allocation14 + $0xe58] sm:$0xff]
    %v887 = vld [vmem:[#allocation14 + $0xe60] sm:$0xff]
    %v888 = vld [vmem:[#allocation14 + $0xe68] sm:$0xff]
    %v889 = vld [vmem:[#allocation14 + $0xe70] sm:$0xff]
    %v890 = vld [vmem:[#allocation14 + $0xe78] sm:$0xff]
    %v891 = vld [vmem:[#allocation14 + $0xe80] sm:$0xff]
    %v892 = vld [vmem:[#allocation14 + $0xe88] sm:$0xff]
    %v893 = vld [vmem:[#allocation14 + $0xe90] sm:$0xff]
    %v894 = vld [vmem:[#allocation14 + $0xe98] sm:$0xff]
    %v895 = vld [vmem:[#allocation14 + $0xea0] sm:$0xff]
    %v896 = vld [vmem:[#allocation14 + $0xea8] sm:$0xff]
    %v897 = vld [vmem:[#allocation14 + $0xeb0] sm:$0xff]
    %v898 = vld [vmem:[#allocation14 + $0xeb8] sm:$0xff]
    %v899 = vld [vmem:[#allocation14 + $0xec0] sm:$0xff]
    %v900 = vld [vmem:[#allocation14 + $0xec8] sm:$0xff]
    %v901 = vld [vmem:[#allocation14 + $0xed0] sm:$0xff]
    %v902 = vld [vmem:[#allocation14 + $0xed8] sm:$0xff]
    %v903 = vld [vmem:[#allocation14 + $0xee0] sm:$0xff]
    %v904 = vld [vmem:[#allocation14 + $0xee8] sm:$0xff]
    %v905 = vld [vmem:[#allocation14 + $0xef0] sm:$0xff]
    %v906 = vld [vmem:[#allocation14 + $0xef8] sm:$0xff]
    %v907 = vld [vmem:[#allocation14 + $0xf00] sm:$0xff]
    %v908 = vld [vmem:[#allocation14 + $0xf08] sm:$0xff]
    %v909 = vld [vmem:[#allocation14 + $0xf10] sm:$0xff]
    %v910 = vld [vmem:[#allocation14 + $0xf18] sm:$0xff]
    %v911 = vld [vmem:[#allocation14 + $0xf20] sm:$0xff]
    %v912 = vld [vmem:[#allocation14 + $0xf28] sm:$0xff]
    %v913 = vld [vmem:[#allocation14 + $0xf30] sm:$0xff]
    %v914 = vld [vmem:[#allocation14 + $0xf38] sm:$0xff]
    %v915 = vld [vmem:[#allocation14 + $0xf40] sm:$0xff]
    %v916 = vld [vmem:[#allocation14 + $0xf48] sm:$0xff]
    %v917 = vld [vmem:[#allocation14 + $0xf50] sm:$0xff]
    %v918 = vld [vmem:[#allocation14 + $0xf58] sm:$0xff]
    %v919 = vld [vmem:[#allocation14 + $0xf60] sm:$0xff]
    %v920 = vld [vmem:[#allocation14 + $0xf68] sm:$0xff]
    %v921 = vld [vmem:[#allocation14 + $0xf70] sm:$0xff]
    %v922 = vld [vmem:[#allocation14 + $0xf78] sm:$0xff]
    %v923 = vld [vmem:[#allocation14 + $0xf80] sm:$0xff]
    %v924 = vld [vmem:[#allocation14 + $0xf88] sm:$0xff]
    %v925 = vld [vmem:[#allocation14 + $0xf90] sm:$0xff]
    %v926 = vld [vmem:[#allocation14 + $0xf98] sm:$0xff]
    %v927 = vld [vmem:[#allocation14 + $0xfa0] sm:$0xff]
    %v928 = vld [vmem:[#allocation14 + $0xfa8] sm:$0xff]
    %v929 = vld [vmem:[#allocation14 + $0xfb0] sm:$0xff]
    %v930 = vld [vmem:[#allocation14 + $0xfb8] sm:$0xff]
    %v931 = vld [vmem:[#allocation14 + $0xfc0] sm:$0xff]
    %v932 = vld [vmem:[#allocation14 + $0xfc8] sm:$0xff]
    %v933 = vld [vmem:[#allocation14 + $0xfd0] sm:$0xff]
    %v934 = vld [vmem:[#allocation14 + $0xfd8] sm:$0xff]
    %v935 = vld [vmem:[#allocation14 + $0xfe0] sm:$0xff]
    %v936 = vld [vmem:[#allocation14 + $0xfe8] sm:$0xff]
    %v937 = vld [vmem:[#allocation14 + $0xff0] sm:$0xff]
    %v938 = vld [vmem:[#allocation14 + $0xff8] sm:$0xff]
    %v939 = vld [vmem:[#allocation16] sm:$0xff]
    %v941 = vperm.slane %v939, 0
    %v942 = vperm.slane %v939, 1
    %v943 = vperm.slane %v939, 2
    %v944 = vperm.slane %v939, 3
    %v945 = vperm.slane %v939, 4
    %v946 = vperm.slane %v939, 5
    %v947 = vperm.slane %v939, 6
    %v948 = vperm.slane %v939, 7
    %957 = vmatpush.msra.mxu0 %v547
    %958 = vmatpush.msra.mxu0 %v539
    %959 = vmatpush.msra.mxu0 %v531
    %960 = vmatpush.msra.mxu0 %v523
    %961 = vmatpush.msra.mxu0 %v515
    %962 = vmatpush.msra.mxu0 %v507
    %963 = vmatpush.msra.mxu0 %v499
    %964 = vmatpush.msra.mxu0 %v491
    %965 = vmatpush.msra.mxu0 %v483
    %966 = vmatpush.msra.mxu0 %v475
    %967 = vmatpush.msra.mxu0 %v467
    %968 = vmatpush.msra.mxu0 %v459
    %969 = vmatpush.msra.mxu0 %v451
    %970 = vmatpush.msra.mxu0 %v443
    %971 = vmatpush.msra.mxu0 %v435
    %972 = vmatpush.msra.mxu0 %v427
    %973 = vmatmul.f32.gmra.mxu0 %v423
    %v974 = vpop.f32.mrf.mxu0
    %v975 = vadd.f32 %v941, %v974
    %976 = vdwg.mxu0
    %977 = vmatpush.msra.mxu0 %v675
    %978 = vmatpush.msra.mxu0 %v667
    %979 = vmatpush.msra.mxu0 %v659
    %980 = vmatpush.msra.mxu0 %v651
    %981 = vmatpush.msra.mxu0 %v643
    %982 = vmatpush.msra.mxu0 %v635
    %983 = vmatpush.msra.mxu0 %v627
    %984 = vmatpush.msra.mxu0 %v619
    %985 = vmatpush.msra.mxu0 %v611
    %986 = vmatpush.msra.mxu0 %v603
    %987 = vmatpush.msra.mxu0 %v595
    %988 = vmatpush.msra.mxu0 %v587
    %989 = vmatpush.msra.mxu0 %v579
    %990 = vmatpush.msra.mxu0 %v571
    %991 = vmatpush.msra.mxu0 %v563
    %992 = vmatpush.msra.mxu0 %v555
    %993 = vmatmul.f32.gmra.mxu0 %v424
    %v994 = vpop.f32.mrf.mxu0
    %v995 = vadd.f32 %v975, %v994
    %996 = vdwg.mxu0
    %997 = vmatpush.msra.mxu0 %v803
    %998 = vmatpush.msra.mxu0 %v795
    %999 = vmatpush.msra.mxu0 %v787
    %1000 = vmatpush.msra.mxu0 %v779
    %1001 = vmatpush.msra.mxu0 %v771
    %1002 = vmatpush.msra.mxu0 %v763
    %1003 = vmatpush.msra.mxu0 %v755
    %1004 = vmatpush.msra.mxu0 %v747
    %1005 = vmatpush.msra.mxu0 %v739
    %1006 = vmatpush.msra.mxu0 %v731
    %1007 = vmatpush.msra.mxu0 %v723
    %1008 = vmatpush.msra.mxu0 %v715
    %1009 = vmatpush.msra.mxu0 %v707
    %1010 = vmatpush.msra.mxu0 %v699
    %1011 = vmatpush.msra.mxu0 %v691
    %1012 = vmatpush.msra.mxu0 %v683
    %1013 = vmatmul.f32.gmra.mxu0 %v425
    %v1014 = vpop.f32.mrf.mxu0
    %v1015 = vadd.f32 %v995, %v1014
    %1016 = vdwg.mxu0
    %1017 = vmatpush.msra.mxu0 %v931
    %1018 = vmatpush.msra.mxu0 %v923
    %1019 = vmatpush.msra.mxu0 %v915
    %1020 = vmatpush.msra.mxu0 %v907
    %1021 = vmatpush.msra.mxu0 %v899
    %1022 = vmatpush.msra.mxu0 %v891
    %1023 = vmatpush.msra.mxu0 %v883
    %1024 = vmatpush.msra.mxu0 %v875
    %1025 = vmatpush.msra.mxu0 %v867
    %1026 = vmatpush.msra.mxu0 %v859
    %1027 = vmatpush.msra.mxu0 %v851
    %1028 = vmatpush.msra.mxu0 %v843
    %1029 = vmatpush.msra.mxu0 %v835
    %1030 = vmatpush.msra.mxu0 %v827
    %1031 = vmatpush.msra.mxu0 %v819
    %1032 = vmatpush.msra.mxu0 %v811
    %1033 = vmatmul.f32.gmra.mxu0 %v426
    %v1034 = vpop.f32.mrf.mxu0
    %v1035 = vadd.f32 %v1015, %v1034
    %1036 = vdwg.mxu0
    %1037 = vmatpush.msra.mxu0 %v548
    %1038 = vmatpush.msra.mxu0 %v540
    %1039 = vmatpush.msra.mxu0 %v532
    %1040 = vmatpush.msra.mxu0 %v524
    %1041 = vmatpush.msra.mxu0 %v516
    %1042 = vmatpush.msra.mxu0 %v508
    %1043 = vmatpush.msra.mxu0 %v500
    %1044 = vmatpush.msra.mxu0 %v492
    %1045 = vmatpush.msra.mxu0 %v484
    %1046 = vmatpush.msra.mxu0 %v476
    %1047 = vmatpush.msra.mxu0 %v468
    %1048 = vmatpush.msra.mxu0 %v460
    %1049 = vmatpush.msra.mxu0 %v452
    %1050 = vmatpush.msra.mxu0 %v444
    %1051 = vmatpush.msra.mxu0 %v436
    %1052 = vmatpush.msra.mxu0 %v428
    %1053 = vmatmul.f32.gmra.mxu0 %v423
    %v1054 = vpop.f32.mrf.mxu0
    %v1055 = vadd.f32 %v942, %v1054
    %1056 = vdwg.mxu0
    %1057 = vmatpush.msra.mxu0 %v676
    %1058 = vmatpush.msra.mxu0 %v668
    %1059 = vmatpush.msra.mxu0 %v660
    %1060 = vmatpush.msra.mxu0 %v652
    %1061 = vmatpush.msra.mxu0 %v644
    %1062 = vmatpush.msra.mxu0 %v636
    %1063 = vmatpush.msra.mxu0 %v628
    %1064 = vmatpush.msra.mxu0 %v620
    %1065 = vmatpush.msra.mxu0 %v612
    %1066 = vmatpush.msra.mxu0 %v604
    %1067 = vmatpush.msra.mxu0 %v596
    %1068 = vmatpush.msra.mxu0 %v588
    %1069 = vmatpush.msra.mxu0 %v580
    %1070 = vmatpush.msra.mxu0 %v572
    %1071 = vmatpush.msra.mxu0 %v564
    %1072 = vmatpush.msra.mxu0 %v556
    %1073 = vmatmul.f32.gmra.mxu0 %v424
    %v1074 = vpop.f32.mrf.mxu0
    %v1075 = vadd.f32 %v1055, %v1074
    %1076 = vdwg.mxu0
    %1077 = vmatpush.msra.mxu0 %v804
    %1078 = vmatpush.msra.mxu0 %v796
    %1079 = vmatpush.msra.mxu0 %v788
    %1080 = vmatpush.msra.mxu0 %v780
    %1081 = vmatpush.msra.mxu0 %v772
    %1082 = vmatpush.msra.mxu0 %v764
    %1083 = vmatpush.msra.mxu0 %v756
    %1084 = vmatpush.msra.mxu0 %v748
    %1085 = vmatpush.msra.mxu0 %v740
    %1086 = vmatpush.msra.mxu0 %v732
    %1087 = vmatpush.msra.mxu0 %v724
    %1088 = vmatpush.msra.mxu0 %v716
    %1089 = vmatpush.msra.mxu0 %v708
    %1090 = vmatpush.msra.mxu0 %v700
    %1091 = vmatpush.msra.mxu0 %v692
    %1092 = vmatpush.msra.mxu0 %v684
    %1093 = vmatmul.f32.gmra.mxu0 %v425
    %v1094 = vpop.f32.mrf.mxu0
    %v1095 = vadd.f32 %v1075, %v1094
    %1096 = vdwg.mxu0
    %1097 = vmatpush.msra.mxu0 %v932
    %1098 = vmatpush.msra.mxu0 %v924
    %1099 = vmatpush.msra.mxu0 %v916
    %1100 = vmatpush.msra.mxu0 %v908
    %1101 = vmatpush.msra.mxu0 %v900
    %1102 = vmatpush.msra.mxu0 %v892
    %1103 = vmatpush.msra.mxu0 %v884
    %1104 = vmatpush.msra.mxu0 %v876
    %1105 = vmatpush.msra.mxu0 %v868
    %1106 = vmatpush.msra.mxu0 %v860
    %1107 = vmatpush.msra.mxu0 %v852
    %1108 = vmatpush.msra.mxu0 %v844
    %1109 = vmatpush.msra.mxu0 %v836
    %1110 = vmatpush.msra.mxu0 %v828
    %1111 = vmatpush.msra.mxu0 %v820
    %1112 = vmatpush.msra.mxu0 %v812
    %1113 = vmatmul.f32.gmra.mxu0 %v426
    %v1114 = vpop.f32.mrf.mxu0
    %v1115 = vadd.f32 %v1095, %v1114
    %1116 = vdwg.mxu0
    %1117 = vmatpush.msra.mxu0 %v549
    %1118 = vmatpush.msra.mxu0 %v541
    %1119 = vmatpush.msra.mxu0 %v533
    %1120 = vmatpush.msra.mxu0 %v525
    %1121 = vmatpush.msra.mxu0 %v517
    %1122 = vmatpush.msra.mxu0 %v509
    %1123 = vmatpush.msra.mxu0 %v501
    %1124 = vmatpush.msra.mxu0 %v493
    %1125 = vmatpush.msra.mxu0 %v485
    %1126 = vmatpush.msra.mxu0 %v477
    %1127 = vmatpush.msra.mxu0 %v469
    %1128 = vmatpush.msra.mxu0 %v461
    %1129 = vmatpush.msra.mxu0 %v453
    %1130 = vmatpush.msra.mxu0 %v445
    %1131 = vmatpush.msra.mxu0 %v437
    %1132 = vmatpush.msra.mxu0 %v429
    %1133 = vmatmul.f32.gmra.mxu0 %v423
    %v1134 = vpop.f32.mrf.mxu0
    %v1135 = vadd.f32 %v943, %v1134
    %1136 = vdwg.mxu0
    %1137 = vmatpush.msra.mxu0 %v677
    %1138 = vmatpush.msra.mxu0 %v669
    %1139 = vmatpush.msra.mxu0 %v661
    %1140 = vmatpush.msra.mxu0 %v653
    %1141 = vmatpush.msra.mxu0 %v645
    %1142 = vmatpush.msra.mxu0 %v637
    %1143 = vmatpush.msra.mxu0 %v629
    %1144 = vmatpush.msra.mxu0 %v621
    %1145 = vmatpush.msra.mxu0 %v613
    %1146 = vmatpush.msra.mxu0 %v605
    %1147 = vmatpush.msra.mxu0 %v597
    %1148 = vmatpush.msra.mxu0 %v589
    %1149 = vmatpush.msra.mxu0 %v581
    %1150 = vmatpush.msra.mxu0 %v573
    %1151 = vmatpush.msra.mxu0 %v565
    %1152 = vmatpush.msra.mxu0 %v557
    %1153 = vmatmul.f32.gmra.mxu0 %v424
    %v1154 = vpop.f32.mrf.mxu0
    %v1155 = vadd.f32 %v1135, %v1154
    %1156 = vdwg.mxu0
    %1157 = vmatpush.msra.mxu0 %v805
    %1158 = vmatpush.msra.mxu0 %v797
    %1159 = vmatpush.msra.mxu0 %v789
    %1160 = vmatpush.msra.mxu0 %v781
    %1161 = vmatpush.msra.mxu0 %v773
    %1162 = vmatpush.msra.mxu0 %v765
    %1163 = vmatpush.msra.mxu0 %v757
    %1164 = vmatpush.msra.mxu0 %v749
    %1165 = vmatpush.msra.mxu0 %v741
    %1166 = vmatpush.msra.mxu0 %v733
    %1167 = vmatpush.msra.mxu0 %v725
    %1168 = vmatpush.msra.mxu0 %v717
    %1169 = vmatpush.msra.mxu0 %v709
    %1170 = vmatpush.msra.mxu0 %v701
    %1171 = vmatpush.msra.mxu0 %v693
    %1172 = vmatpush.msra.mxu0 %v685
    %1173 = vmatmul.f32.gmra.mxu0 %v425
    %v1174 = vpop.f32.mrf.mxu0
    %v1175 = vadd.f32 %v1155, %v1174
    %1176 = vdwg.mxu0
    %1177 = vmatpush.msra.mxu0 %v933
    %1178 = vmatpush.msra.mxu0 %v925
    %1179 = vmatpush.msra.mxu0 %v917
    %1180 = vmatpush.msra.mxu0 %v909
    %1181 = vmatpush.msra.mxu0 %v901
    %1182 = vmatpush.msra.mxu0 %v893
    %1183 = vmatpush.msra.mxu0 %v885
    %1184 = vmatpush.msra.mxu0 %v877
    %1185 = vmatpush.msra.mxu0 %v869
    %1186 = vmatpush.msra.mxu0 %v861
    %1187 = vmatpush.msra.mxu0 %v853
    %1188 = vmatpush.msra.mxu0 %v845
    %1189 = vmatpush.msra.mxu0 %v837
    %1190 = vmatpush.msra.mxu0 %v829
    %1191 = vmatpush.msra.mxu0 %v821
    %1192 = vmatpush.msra.mxu0 %v813
    %1193 = vmatmul.f32.gmra.mxu0 %v426
    %v1194 = vpop.f32.mrf.mxu0
    %v1195 = vadd.f32 %v1175, %v1194
    %1196 = vdwg.mxu0
    %1197 = vmatpush.msra.mxu0 %v550
    %1198 = vmatpush.msra.mxu0 %v542
    %1199 = vmatpush.msra.mxu0 %v534
    %1200 = vmatpush.msra.mxu0 %v526
    %1201 = vmatpush.msra.mxu0 %v518
    %1202 = vmatpush.msra.mxu0 %v510
    %1203 = vmatpush.msra.mxu0 %v502
    %1204 = vmatpush.msra.mxu0 %v494
    %1205 = vmatpush.msra.mxu0 %v486
    %1206 = vmatpush.msra.mxu0 %v478
    %1207 = vmatpush.msra.mxu0 %v470
    %1208 = vmatpush.msra.mxu0 %v462
    %1209 = vmatpush.msra.mxu0 %v454
    %1210 = vmatpush.msra.mxu0 %v446
    %1211 = vmatpush.msra.mxu0 %v438
    %1212 = vmatpush.msra.mxu0 %v430
    %1213 = vmatmul.f32.gmra.mxu0 %v423
    %v1214 = vpop.f32.mrf.mxu0
    %v1215 = vadd.f32 %v944, %v1214
    %1216 = vdwg.mxu0
    %1217 = vmatpush.msra.mxu0 %v678
    %1218 = vmatpush.msra.mxu0 %v670
    %1219 = vmatpush.msra.mxu0 %v662
    %1220 = vmatpush.msra.mxu0 %v654
    %1221 = vmatpush.msra.mxu0 %v646
    %1222 = vmatpush.msra.mxu0 %v638
    %1223 = vmatpush.msra.mxu0 %v630
    %1224 = vmatpush.msra.mxu0 %v622
    %1225 = vmatpush.msra.mxu0 %v614
    %1226 = vmatpush.msra.mxu0 %v606
    %1227 = vmatpush.msra.mxu0 %v598
    %1228 = vmatpush.msra.mxu0 %v590
    %1229 = vmatpush.msra.mxu0 %v582
    %1230 = vmatpush.msra.mxu0 %v574
    %1231 = vmatpush.msra.mxu0 %v566
    %1232 = vmatpush.msra.mxu0 %v558
    %1233 = vmatmul.f32.gmra.mxu0 %v424
    %v1234 = vpop.f32.mrf.mxu0
    %v1235 = vadd.f32 %v1215, %v1234
    %1236 = vdwg.mxu0
    %1237 = vmatpush.msra.mxu0 %v806
    %1238 = vmatpush.msra.mxu0 %v798
    %1239 = vmatpush.msra.mxu0 %v790
    %1240 = vmatpush.msra.mxu0 %v782
    %1241 = vmatpush.msra.mxu0 %v774
    %1242 = vmatpush.msra.mxu0 %v766
    %1243 = vmatpush.msra.mxu0 %v758
    %1244 = vmatpush.msra.mxu0 %v750
    %1245 = vmatpush.msra.mxu0 %v742
    %1246 = vmatpush.msra.mxu0 %v734
    %1247 = vmatpush.msra.mxu0 %v726
    %1248 = vmatpush.msra.mxu0 %v718
    %1249 = vmatpush.msra.mxu0 %v710
    %1250 = vmatpush.msra.mxu0 %v702
    %1251 = vmatpush.msra.mxu0 %v694
    %1252 = vmatpush.msra.mxu0 %v686
    %1253 = vmatmul.f32.gmra.mxu0 %v425
    %v1254 = vpop.f32.mrf.mxu0
    %v1255 = vadd.f32 %v1235, %v1254
    %1256 = vdwg.mxu0
    %1257 = vmatpush.msra.mxu0 %v934
    %1258 = vmatpush.msra.mxu0 %v926
    %1259 = vmatpush.msra.mxu0 %v918
    %1260 = vmatpush.msra.mxu0 %v910
    %1261 = vmatpush.msra.mxu0 %v902
    %1262 = vmatpush.msra.mxu0 %v894
    %1263 = vmatpush.msra.mxu0 %v886
    %1264 = vmatpush.msra.mxu0 %v878
    %1265 = vmatpush.msra.mxu0 %v870
    %1266 = vmatpush.msra.mxu0 %v862
    %1267 = vmatpush.msra.mxu0 %v854
    %1268 = vmatpush.msra.mxu0 %v846
    %1269 = vmatpush.msra.mxu0 %v838
    %1270 = vmatpush.msra.mxu0 %v830
    %1271 = vmatpush.msra.mxu0 %v822
    %1272 = vmatpush.msra.mxu0 %v814
    %1273 = vmatmul.f32.gmra.mxu0 %v426
    %v1274 = vpop.f32.mrf.mxu0
    %v1275 = vadd.f32 %v1255, %v1274
    %1276 = vdwg.mxu0
    %1277 = vmatpush.msra.mxu0 %v551
    %1278 = vmatpush.msra.mxu0 %v543
    %1279 = vmatpush.msra.mxu0 %v535
    %1280 = vmatpush.msra.mxu0 %v527
    %1281 = vmatpush.msra.mxu0 %v519
    %1282 = vmatpush.msra.mxu0 %v511
    %1283 = vmatpush.msra.mxu0 %v503
    %1284 = vmatpush.msra.mxu0 %v495
    %1285 = vmatpush.msra.mxu0 %v487
    %1286 = vmatpush.msra.mxu0 %v479
    %1287 = vmatpush.msra.mxu0 %v471
    %1288 = vmatpush.msra.mxu0 %v463
    %1289 = vmatpush.msra.mxu0 %v455
    %1290 = vmatpush.msra.mxu0 %v447
    %1291 = vmatpush.msra.mxu0 %v439
    %1292 = vmatpush.msra.mxu0 %v431
    %1293 = vmatmul.f32.gmra.mxu0 %v423
    %v1294 = vpop.f32.mrf.mxu0
    %v1295 = vadd.f32 %v945, %v1294
    %1296 = vdwg.mxu0
    %1297 = vmatpush.msra.mxu0 %v679
    %1298 = vmatpush.msra.mxu0 %v671
    %1299 = vmatpush.msra.mxu0 %v663
    %1300 = vmatpush.msra.mxu0 %v655
    %1301 = vmatpush.msra.mxu0 %v647
    %1302 = vmatpush.msra.mxu0 %v639
    %1303 = vmatpush.msra.mxu0 %v631
    %1304 = vmatpush.msra.mxu0 %v623
    %1305 = vmatpush.msra.mxu0 %v615
    %1306 = vmatpush.msra.mxu0 %v607
    %1307 = vmatpush.msra.mxu0 %v599
    %1308 = vmatpush.msra.mxu0 %v591
    %1309 = vmatpush.msra.mxu0 %v583
    %1310 = vmatpush.msra.mxu0 %v575
    %1311 = vmatpush.msra.mxu0 %v567
    %1312 = vmatpush.msra.mxu0 %v559
    %1313 = vmatmul.f32.gmra.mxu0 %v424
    %v1314 = vpop.f32.mrf.mxu0
    %v1315 = vadd.f32 %v1295, %v1314
    %1316 = vdwg.mxu0
    %1317 = vmatpush.msra.mxu0 %v807
    %1318 = vmatpush.msra.mxu0 %v799
    %1319 = vmatpush.msra.mxu0 %v791
    %1320 = vmatpush.msra.mxu0 %v783
    %1321 = vmatpush.msra.mxu0 %v775
    %1322 = vmatpush.msra.mxu0 %v767
    %1323 = vmatpush.msra.mxu0 %v759
    %1324 = vmatpush.msra.mxu0 %v751
    %1325 = vmatpush.msra.mxu0 %v743
    %1326 = vmatpush.msra.mxu0 %v735
    %1327 = vmatpush.msra.mxu0 %v727
    %1328 = vmatpush.msra.mxu0 %v719
    %1329 = vmatpush.msra.mxu0 %v711
    %1330 = vmatpush.msra.mxu0 %v703
    %1331 = vmatpush.msra.mxu0 %v695
    %1332 = vmatpush.msra.mxu0 %v687
    %1333 = vmatmul.f32.gmra.mxu0 %v425
    %v1334 = vpop.f32.mrf.mxu0
    %v1335 = vadd.f32 %v1315, %v1334
    %1336 = vdwg.mxu0
    %1337 = vmatpush.msra.mxu0 %v935
    %1338 = vmatpush.msra.mxu0 %v927
    %1339 = vmatpush.msra.mxu0 %v919
    %1340 = vmatpush.msra.mxu0 %v911
    %1341 = vmatpush.msra.mxu0 %v903
    %1342 = vmatpush.msra.mxu0 %v895
    %1343 = vmatpush.msra.mxu0 %v887
    %1344 = vmatpush.msra.mxu0 %v879
    %1345 = vmatpush.msra.mxu0 %v871
    %1346 = vmatpush.msra.mxu0 %v863
    %1347 = vmatpush.msra.mxu0 %v855
    %1348 = vmatpush.msra.mxu0 %v847
    %1349 = vmatpush.msra.mxu0 %v839
    %1350 = vmatpush.msra.mxu0 %v831
    %1351 = vmatpush.msra.mxu0 %v823
    %1352 = vmatpush.msra.mxu0 %v815
    %1353 = vmatmul.f32.gmra.mxu0 %v426
    %v1354 = vpop.f32.mrf.mxu0
    %v1355 = vadd.f32 %v1335, %v1354
    %1356 = vdwg.mxu0
    %1357 = vmatpush.msra.mxu0 %v552
    %1358 = vmatpush.msra.mxu0 %v544
    %1359 = vmatpush.msra.mxu0 %v536
    %1360 = vmatpush.msra.mxu0 %v528
    %1361 = vmatpush.msra.mxu0 %v520
    %1362 = vmatpush.msra.mxu0 %v512
    %1363 = vmatpush.msra.mxu0 %v504
    %1364 = vmatpush.msra.mxu0 %v496
    %1365 = vmatpush.msra.mxu0 %v488
    %1366 = vmatpush.msra.mxu0 %v480
    %1367 = vmatpush.msra.mxu0 %v472
    %1368 = vmatpush.msra.mxu0 %v464
    %1369 = vmatpush.msra.mxu0 %v456
    %1370 = vmatpush.msra.mxu0 %v448
    %1371 = vmatpush.msra.mxu0 %v440
    %1372 = vmatpush.msra.mxu0 %v432
    %1373 = vmatmul.f32.gmra.mxu0 %v423
    %v1374 = vpop.f32.mrf.mxu0
    %v1375 = vadd.f32 %v946, %v1374
    %1376 = vdwg.mxu0
    %1377 = vmatpush.msra.mxu0 %v680
    %1378 = vmatpush.msra.mxu0 %v672
    %1379 = vmatpush.msra.mxu0 %v664
    %1380 = vmatpush.msra.mxu0 %v656
    %1381 = vmatpush.msra.mxu0 %v648
    %1382 = vmatpush.msra.mxu0 %v640
    %1383 = vmatpush.msra.mxu0 %v632
    %1384 = vmatpush.msra.mxu0 %v624
    %1385 = vmatpush.msra.mxu0 %v616
    %1386 = vmatpush.msra.mxu0 %v608
    %1387 = vmatpush.msra.mxu0 %v600
    %1388 = vmatpush.msra.mxu0 %v592
    %1389 = vmatpush.msra.mxu0 %v584
    %1390 = vmatpush.msra.mxu0 %v576
    %1391 = vmatpush.msra.mxu0 %v568
    %1392 = vmatpush.msra.mxu0 %v560
    %1393 = vmatmul.f32.gmra.mxu0 %v424
    %v1394 = vpop.f32.mrf.mxu0
    %v1395 = vadd.f32 %v1375, %v1394
    %1396 = vdwg.mxu0
    %1397 = vmatpush.msra.mxu0 %v808
    %1398 = vmatpush.msra.mxu0 %v800
    %1399 = vmatpush.msra.mxu0 %v792
    %1400 = vmatpush.msra.mxu0 %v784
    %1401 = vmatpush.msra.mxu0 %v776
    %1402 = vmatpush.msra.mxu0 %v768
    %1403 = vmatpush.msra.mxu0 %v760
    %1404 = vmatpush.msra.mxu0 %v752
    %1405 = vmatpush.msra.mxu0 %v744
    %1406 = vmatpush.msra.mxu0 %v736
    %1407 = vmatpush.msra.mxu0 %v728
    %1408 = vmatpush.msra.mxu0 %v720
    %1409 = vmatpush.msra.mxu0 %v712
    %1410 = vmatpush.msra.mxu0 %v704
    %1411 = vmatpush.msra.mxu0 %v696
    %1412 = vmatpush.msra.mxu0 %v688
    %1413 = vmatmul.f32.gmra.mxu0 %v425
    %v1414 = vpop.f32.mrf.mxu0
    %v1415 = vadd.f32 %v1395, %v1414
    %1416 = vdwg.mxu0
    %1417 = vmatpush.msra.mxu0 %v936
    %1418 = vmatpush.msra.mxu0 %v928
    %1419 = vmatpush.msra.mxu0 %v920
    %1420 = vmatpush.msra.mxu0 %v912
    %1421 = vmatpush.msra.mxu0 %v904
    %1422 = vmatpush.msra.mxu0 %v896
    %1423 = vmatpush.msra.mxu0 %v888
    %1424 = vmatpush.msra.mxu0 %v880
    %1425 = vmatpush.msra.mxu0 %v872
    %1426 = vmatpush.msra.mxu0 %v864
    %1427 = vmatpush.msra.mxu0 %v856
    %1428 = vmatpush.msra.mxu0 %v848
    %1429 = vmatpush.msra.mxu0 %v840
    %1430 = vmatpush.msra.mxu0 %v832
    %1431 = vmatpush.msra.mxu0 %v824
    %1432 = vmatpush.msra.mxu0 %v816
    %1433 = vmatmul.f32.gmra.mxu0 %v426
    %v1434 = vpop.f32.mrf.mxu0
    %v1435 = vadd.f32 %v1415, %v1434
    %1436 = vdwg.mxu0
    %1437 = vmatpush.msra.mxu0 %v553
    %1438 = vmatpush.msra.mxu0 %v545
    %1439 = vmatpush.msra.mxu0 %v537
    %1440 = vmatpush.msra.mxu0 %v529
    %1441 = vmatpush.msra.mxu0 %v521
    %1442 = vmatpush.msra.mxu0 %v513
    %1443 = vmatpush.msra.mxu0 %v505
    %1444 = vmatpush.msra.mxu0 %v497
    %1445 = vmatpush.msra.mxu0 %v489
    %1446 = vmatpush.msra.mxu0 %v481
    %1447 = vmatpush.msra.mxu0 %v473
    %1448 = vmatpush.msra.mxu0 %v465
    %1449 = vmatpush.msra.mxu0 %v457
    %1450 = vmatpush.msra.mxu0 %v449
    %1451 = vmatpush.msra.mxu0 %v441
    %1452 = vmatpush.msra.mxu0 %v433
    %1453 = vmatmul.f32.gmra.mxu0 %v423
    %v1454 = vpop.f32.mrf.mxu0
    %v1455 = vadd.f32 %v947, %v1454
    %1456 = vdwg.mxu0
    %1457 = vmatpush.msra.mxu0 %v681
    %1458 = vmatpush.msra.mxu0 %v673
    %1459 = vmatpush.msra.mxu0 %v665
    %1460 = vmatpush.msra.mxu0 %v657
    %1461 = vmatpush.msra.mxu0 %v649
    %1462 = vmatpush.msra.mxu0 %v641
    %1463 = vmatpush.msra.mxu0 %v633
    %1464 = vmatpush.msra.mxu0 %v625
    %1465 = vmatpush.msra.mxu0 %v617
    %1466 = vmatpush.msra.mxu0 %v609
    %1467 = vmatpush.msra.mxu0 %v601
    %1468 = vmatpush.msra.mxu0 %v593
    %1469 = vmatpush.msra.mxu0 %v585
    %1470 = vmatpush.msra.mxu0 %v577
    %1471 = vmatpush.msra.mxu0 %v569
    %1472 = vmatpush.msra.mxu0 %v561
    %1473 = vmatmul.f32.gmra.mxu0 %v424
    %v1474 = vpop.f32.mrf.mxu0
    %v1475 = vadd.f32 %v1455, %v1474
    %1476 = vdwg.mxu0
    %1477 = vmatpush.msra.mxu0 %v809
    %1478 = vmatpush.msra.mxu0 %v801
    %1479 = vmatpush.msra.mxu0 %v793
    %1480 = vmatpush.msra.mxu0 %v785
    %1481 = vmatpush.msra.mxu0 %v777
    %1482 = vmatpush.msra.mxu0 %v769
    %1483 = vmatpush.msra.mxu0 %v761
    %1484 = vmatpush.msra.mxu0 %v753
    %1485 = vmatpush.msra.mxu0 %v745
    %1486 = vmatpush.msra.mxu0 %v737
    %1487 = vmatpush.msra.mxu0 %v729
    %1488 = vmatpush.msra.mxu0 %v721
    %1489 = vmatpush.msra.mxu0 %v713
    %1490 = vmatpush.msra.mxu0 %v705
    %1491 = vmatpush.msra.mxu0 %v697
    %1492 = vmatpush.msra.mxu0 %v689
    %1493 = vmatmul.f32.gmra.mxu0 %v425
    %v1494 = vpop.f32.mrf.mxu0
    %v1495 = vadd.f32 %v1475, %v1494
    %1496 = vdwg.mxu0
    %1497 = vmatpush.msra.mxu0 %v937
    %1498 = vmatpush.msra.mxu0 %v929
    %1499 = vmatpush.msra.mxu0 %v921
    %1500 = vmatpush.msra.mxu0 %v913
    %1501 = vmatpush.msra.mxu0 %v905
    %1502 = vmatpush.msra.mxu0 %v897
    %1503 = vmatpush.msra.mxu0 %v889
    %1504 = vmatpush.msra.mxu0 %v881
    %1505 = vmatpush.msra.mxu0 %v873
    %1506 = vmatpush.msra.mxu0 %v865
    %1507 = vmatpush.msra.mxu0 %v857
    %1508 = vmatpush.msra.mxu0 %v849
    %1509 = vmatpush.msra.mxu0 %v841
    %1510 = vmatpush.msra.mxu0 %v833
    %1511 = vmatpush.msra.mxu0 %v825
    %1512 = vmatpush.msra.mxu0 %v817
    %1513 = vmatmul.f32.gmra.mxu0 %v426
    %v1514 = vpop.f32.mrf.mxu0
    %v1515 = vadd.f32 %v1495, %v1514
    %1516 = vdwg.mxu0
    %1517 = vmatpush.msra.mxu0 %v554
    %1518 = vmatpush.msra.mxu0 %v546
    %1519 = vmatpush.msra.mxu0 %v538
    %1520 = vmatpush.msra.mxu0 %v530
    %1521 = vmatpush.msra.mxu0 %v522
    %1522 = vmatpush.msra.mxu0 %v514
    %1523 = vmatpush.msra.mxu0 %v506
    %1524 = vmatpush.msra.mxu0 %v498
    %1525 = vmatpush.msra.mxu0 %v490
    %1526 = vmatpush.msra.mxu0 %v482
    %1527 = vmatpush.msra.mxu0 %v474
    %1528 = vmatpush.msra.mxu0 %v466
    %1529 = vmatpush.msra.mxu0 %v458
    %1530 = vmatpush.msra.mxu0 %v450
    %1531 = vmatpush.msra.mxu0 %v442
    %1532 = vmatpush.msra.mxu0 %v434
    %1533 = vmatmul.f32.gmra.mxu0 %v423
    %v1534 = vpop.f32.mrf.mxu0
    %v1535 = vadd.f32 %v948, %v1534
    %1536 = vdwg.mxu0
    %1537 = vmatpush.msra.mxu0 %v682
    %1538 = vmatpush.msra.mxu0 %v674
    %1539 = vmatpush.msra.mxu0 %v666
    %1540 = vmatpush.msra.mxu0 %v658
    %1541 = vmatpush.msra.mxu0 %v650
    %1542 = vmatpush.msra.mxu0 %v642
    %1543 = vmatpush.msra.mxu0 %v634
    %1544 = vmatpush.msra.mxu0 %v626
    %1545 = vmatpush.msra.mxu0 %v618
    %1546 = vmatpush.msra.mxu0 %v610
    %1547 = vmatpush.msra.mxu0 %v602
    %1548 = vmatpush.msra.mxu0 %v594
    %1549 = vmatpush.msra.mxu0 %v586
    %1550 = vmatpush.msra.mxu0 %v578
    %1551 = vmatpush.msra.mxu0 %v570
    %1552 = vmatpush.msra.mxu0 %v562
    %1553 = vmatmul.f32.gmra.mxu0 %v424
    %v1554 = vpop.f32.mrf.mxu0
    %v1555 = vadd.f32 %v1535, %v1554
    %1556 = vdwg.mxu0
    %1557 = vmatpush.msra.mxu0 %v810
    %1558 = vmatpush.msra.mxu0 %v802
    %1559 = vmatpush.msra.mxu0 %v794
    %1560 = vmatpush.msra.mxu0 %v786
    %1561 = vmatpush.msra.mxu0 %v778
    %1562 = vmatpush.msra.mxu0 %v770
    %1563 = vmatpush.msra.mxu0 %v762
    %1564 = vmatpush.msra.mxu0 %v754
    %1565 = vmatpush.msra.mxu0 %v746
    %1566 = vmatpush.msra.mxu0 %v738
    %1567 = vmatpush.msra.mxu0 %v730
    %1568 = vmatpush.msra.mxu0 %v722
    %1569 = vmatpush.msra.mxu0 %v714
    %1570 = vmatpush.msra.mxu0 %v706
    %1571 = vmatpush.msra.mxu0 %v698
    %1572 = vmatpush.msra.mxu0 %v690
    %1573 = vmatmul.f32.gmra.mxu0 %v425
    %v1574 = vpop.f32.mrf.mxu0
    %v1575 = vadd.f32 %v1555, %v1574
    %1576 = vdwg.mxu0
    %1577 = vmatpush.msra.mxu0 %v938
    %1578 = vmatpush.msra.mxu0 %v930
    %1579 = vmatpush.msra.mxu0 %v922
    %1580 = vmatpush.msra.mxu0 %v914
    %1581 = vmatpush.msra.mxu0 %v906
    %1582 = vmatpush.msra.mxu0 %v898
    %1583 = vmatpush.msra.mxu0 %v890
    %1584 = vmatpush.msra.mxu0 %v882
    %1585 = vmatpush.msra.mxu0 %v874
    %1586 = vmatpush.msra.mxu0 %v866
    %1587 = vmatpush.msra.mxu0 %v858
    %1588 = vmatpush.msra.mxu0 %v850
    %1589 = vmatpush.msra.mxu0 %v842
    %1590 = vmatpush.msra.mxu0 %v834
    %1591 = vmatpush.msra.mxu0 %v826
    %1592 = vmatpush.msra.mxu0 %v818
    %1593 = vmatmul.f32.gmra.mxu0 %v426
    %v1594 = vpop.f32.mrf.mxu0
    %v1595 = vadd.f32 %v1575, %v1594
    %1596 = vdwg.mxu0
    %v1597 = vmax.f32 %v1035, 0.0
    %v1598 = vmax.f32 %v1115, 0.0
    %v1599 = vmax.f32 %v1195, 0.0
    %v1600 = vmax.f32 %v1275, 0.0
    %v1601 = vmax.f32 %v1355, 0.0
    %v1602 = vmax.f32 %v1435, 0.0
    %v1603 = vmax.f32 %v1515, 0.0
    %v1604 = vmax.f32 %v1595, 0.0
    %v1605 = vpack.c.bf16 %v1597, %v1597
    %v1606 = vpack.c.bf16 %v1598, %v1598
    %v1607 = vpack.c.bf16 %v1599, %v1599
    %v1608 = vpack.c.bf16 %v1600, %v1600
    %v1609 = vpack.c.bf16 %v1601, %v1601
    %v1610 = vpack.c.bf16 %v1602, %v1602
    %v1611 = vpack.c.bf16 %v1603, %v1603
    %v1612 = vpack.c.bf16 %v1604, %v1604
    %v1613 = vld [vmem:[#allocation17] sm:$0xf]
    %v1614 = vld [vmem:[#allocation17 + $0x4] sm:$0xf]
    %v1615 = vld [vmem:[#allocation17 + $0x8] sm:$0xf]
    %v1616 = vld [vmem:[#allocation17 + $0xc] sm:$0xf]
    %v1617 = vld [vmem:[#allocation17 + $0x10] sm:$0xf]
    %v1618 = vld [vmem:[#allocation17 + $0x14] sm:$0xf]
    %v1619 = vld [vmem:[#allocation17 + $0x18] sm:$0xf]
    %v1620 = vld [vmem:[#allocation17 + $0x1c] sm:$0xf]
    %v1621 = vld [vmem:[#allocation17 + $0x20] sm:$0xf]
    %v1622 = vld [vmem:[#allocation17 + $0x24] sm:$0xf]
    %v1623 = vld [vmem:[#allocation17 + $0x28] sm:$0xf]
    %v1624 = vld [vmem:[#allocation17 + $0x2c] sm:$0xf]
    %v1625 = vld [vmem:[#allocation17 + $0x30] sm:$0xf]
    %v1626 = vld [vmem:[#allocation17 + $0x34] sm:$0xf]
    %v1627 = vld [vmem:[#allocation17 + $0x38] sm:$0xf]
    %v1628 = vld [vmem:[#allocation17 + $0x3c] sm:$0xf]
    %v1629 = vld [vmem:[#allocation17 + $0x40] sm:$0xf]
    %v1630 = vld [vmem:[#allocation17 + $0x44] sm:$0xf]
    %v1631 = vld [vmem:[#allocation17 + $0x48] sm:$0xf]
    %v1632 = vld [vmem:[#allocation17 + $0x4c] sm:$0xf]
    %v1633 = vld [vmem:[#allocation17 + $0x50] sm:$0xf]
    %v1634 = vld [vmem:[#allocation17 + $0x54] sm:$0xf]
    %v1635 = vld [vmem:[#allocation17 + $0x58] sm:$0xf]
    %v1636 = vld [vmem:[#allocation17 + $0x5c] sm:$0xf]
    %v1637 = vld [vmem:[#allocation17 + $0x60] sm:$0xf]
    %v1638 = vld [vmem:[#allocation17 + $0x64] sm:$0xf]
    %v1639 = vld [vmem:[#allocation17 + $0x68] sm:$0xf]
    %v1640 = vld [vmem:[#allocation17 + $0x6c] sm:$0xf]
    %v1641 = vld [vmem:[#allocation17 + $0x70] sm:$0xf]
    %v1642 = vld [vmem:[#allocation17 + $0x74] sm:$0xf]
    %v1643 = vld [vmem:[#allocation17 + $0x78] sm:$0xf]
    %v1644 = vld [vmem:[#allocation17 + $0x7c] sm:$0xf]
    %v1645 = vld [vmem:[#allocation17 + $0x80] sm:$0xf]
    %v1646 = vld [vmem:[#allocation17 + $0x84] sm:$0xf]
    %v1647 = vld [vmem:[#allocation17 + $0x88] sm:$0xf]
    %v1648 = vld [vmem:[#allocation17 + $0x8c] sm:$0xf]
    %v1649 = vld [vmem:[#allocation17 + $0x90] sm:$0xf]
    %v1650 = vld [vmem:[#allocation17 + $0x94] sm:$0xf]
    %v1651 = vld [vmem:[#allocation17 + $0x98] sm:$0xf]
    %v1652 = vld [vmem:[#allocation17 + $0x9c] sm:$0xf]
    %v1653 = vld [vmem:[#allocation17 + $0xa0] sm:$0xf]
    %v1654 = vld [vmem:[#allocation17 + $0xa4] sm:$0xf]
    %v1655 = vld [vmem:[#allocation17 + $0xa8] sm:$0xf]
    %v1656 = vld [vmem:[#allocation17 + $0xac] sm:$0xf]
    %v1657 = vld [vmem:[#allocation17 + $0xb0] sm:$0xf]
    %v1658 = vld [vmem:[#allocation17 + $0xb4] sm:$0xf]
    %v1659 = vld [vmem:[#allocation17 + $0xb8] sm:$0xf]
    %v1660 = vld [vmem:[#allocation17 + $0xbc] sm:$0xf]
    %v1661 = vld [vmem:[#allocation17 + $0xc0] sm:$0xf]
    %v1662 = vld [vmem:[#allocation17 + $0xc4] sm:$0xf]
    %v1663 = vld [vmem:[#allocation17 + $0xc8] sm:$0xf]
    %v1664 = vld [vmem:[#allocation17 + $0xcc] sm:$0xf]
    %v1665 = vld [vmem:[#allocation17 + $0xd0] sm:$0xf]
    %v1666 = vld [vmem:[#allocation17 + $0xd4] sm:$0xf]
    %v1667 = vld [vmem:[#allocation17 + $0xd8] sm:$0xf]
    %v1668 = vld [vmem:[#allocation17 + $0xdc] sm:$0xf]
    %v1669 = vld [vmem:[#allocation17 + $0xe0] sm:$0xf]
    %v1670 = vld [vmem:[#allocation17 + $0xe4] sm:$0xf]
    %v1671 = vld [vmem:[#allocation17 + $0xe8] sm:$0xf]
    %v1672 = vld [vmem:[#allocation17 + $0xec] sm:$0xf]
    %v1673 = vld [vmem:[#allocation17 + $0xf0] sm:$0xf]
    %v1674 = vld [vmem:[#allocation17 + $0xf4] sm:$0xf]
    %v1675 = vld [vmem:[#allocation17 + $0xf8] sm:$0xf]
    %v1676 = vld [vmem:[#allocation17 + $0xfc] sm:$0xf]
    %v1677 = vld [vmem:[#allocation17 + $0x100] sm:$0xf]
    %v1678 = vld [vmem:[#allocation17 + $0x104] sm:$0xf]
    %v1679 = vld [vmem:[#allocation17 + $0x108] sm:$0xf]
    %v1680 = vld [vmem:[#allocation17 + $0x10c] sm:$0xf]
    %v1681 = vld [vmem:[#allocation17 + $0x110] sm:$0xf]
    %v1682 = vld [vmem:[#allocation17 + $0x114] sm:$0xf]
    %v1683 = vld [vmem:[#allocation17 + $0x118] sm:$0xf]
    %v1684 = vld [vmem:[#allocation17 + $0x11c] sm:$0xf]
    %v1685 = vld [vmem:[#allocation17 + $0x120] sm:$0xf]
    %v1686 = vld [vmem:[#allocation17 + $0x124] sm:$0xf]
    %v1687 = vld [vmem:[#allocation17 + $0x128] sm:$0xf]
    %v1688 = vld [vmem:[#allocation17 + $0x12c] sm:$0xf]
    %v1689 = vld [vmem:[#allocation17 + $0x130] sm:$0xf]
    %v1690 = vld [vmem:[#allocation17 + $0x134] sm:$0xf]
    %v1691 = vld [vmem:[#allocation17 + $0x138] sm:$0xf]
    %v1692 = vld [vmem:[#allocation17 + $0x13c] sm:$0xf]
    %v1693 = vld [vmem:[#allocation17 + $0x140] sm:$0xf]
    %v1694 = vld [vmem:[#allocation17 + $0x144] sm:$0xf]
    %v1695 = vld [vmem:[#allocation17 + $0x148] sm:$0xf]
    %v1696 = vld [vmem:[#allocation17 + $0x14c] sm:$0xf]
    %v1697 = vld [vmem:[#allocation17 + $0x150] sm:$0xf]
    %v1698 = vld [vmem:[#allocation17 + $0x154] sm:$0xf]
    %v1699 = vld [vmem:[#allocation17 + $0x158] sm:$0xf]
    %v1700 = vld [vmem:[#allocation17 + $0x15c] sm:$0xf]
    %v1701 = vld [vmem:[#allocation17 + $0x160] sm:$0xf]
    %v1702 = vld [vmem:[#allocation17 + $0x164] sm:$0xf]
    %v1703 = vld [vmem:[#allocation17 + $0x168] sm:$0xf]
    %v1704 = vld [vmem:[#allocation17 + $0x16c] sm:$0xf]
    %v1705 = vld [vmem:[#allocation17 + $0x170] sm:$0xf]
    %v1706 = vld [vmem:[#allocation17 + $0x174] sm:$0xf]
    %v1707 = vld [vmem:[#allocation17 + $0x178] sm:$0xf]
    %v1708 = vld [vmem:[#allocation17 + $0x17c] sm:$0xf]
    %v1709 = vld [vmem:[#allocation17 + $0x180] sm:$0xf]
    %v1710 = vld [vmem:[#allocation17 + $0x184] sm:$0xf]
    %v1711 = vld [vmem:[#allocation17 + $0x188] sm:$0xf]
    %v1712 = vld [vmem:[#allocation17 + $0x18c] sm:$0xf]
    %v1713 = vld [vmem:[#allocation17 + $0x190] sm:$0xf]
    %v1714 = vld [vmem:[#allocation17 + $0x194] sm:$0xf]
    %v1715 = vld [vmem:[#allocation17 + $0x198] sm:$0xf]
    %v1716 = vld [vmem:[#allocation17 + $0x19c] sm:$0xf]
    %v1717 = vld [vmem:[#allocation17 + $0x1a0] sm:$0xf]
    %v1718 = vld [vmem:[#allocation17 + $0x1a4] sm:$0xf]
    %v1719 = vld [vmem:[#allocation17 + $0x1a8] sm:$0xf]
    %v1720 = vld [vmem:[#allocation17 + $0x1ac] sm:$0xf]
    %v1721 = vld [vmem:[#allocation17 + $0x1b0] sm:$0xf]
    %v1722 = vld [vmem:[#allocation17 + $0x1b4] sm:$0xf]
    %v1723 = vld [vmem:[#allocation17 + $0x1b8] sm:$0xf]
    %v1724 = vld [vmem:[#allocation17 + $0x1bc] sm:$0xf]
    %v1725 = vld [vmem:[#allocation17 + $0x1c0] sm:$0xf]
    %v1726 = vld [vmem:[#allocation17 + $0x1c4] sm:$0xf]
    %v1727 = vld [vmem:[#allocation17 + $0x1c8] sm:$0xf]
    %v1728 = vld [vmem:[#allocation17 + $0x1cc] sm:$0xf]
    %v1729 = vld [vmem:[#allocation17 + $0x1d0] sm:$0xf]
    %v1730 = vld [vmem:[#allocation17 + $0x1d4] sm:$0xf]
    %v1731 = vld [vmem:[#allocation17 + $0x1d8] sm:$0xf]
    %v1732 = vld [vmem:[#allocation17 + $0x1dc] sm:$0xf]
    %v1733 = vld [vmem:[#allocation17 + $0x1e0] sm:$0xf]
    %v1734 = vld [vmem:[#allocation17 + $0x1e4] sm:$0xf]
    %v1735 = vld [vmem:[#allocation17 + $0x1e8] sm:$0xf]
    %v1736 = vld [vmem:[#allocation17 + $0x1ec] sm:$0xf]
    %v1737 = vld [vmem:[#allocation17 + $0x1f0] sm:$0xf]
    %v1738 = vld [vmem:[#allocation17 + $0x1f4] sm:$0xf]
    %v1739 = vld [vmem:[#allocation17 + $0x1f8] sm:$0xf]
    %v1740 = vld [vmem:[#allocation17 + $0x1fc] sm:$0xf]
    %v1741 = vld [vmem:[#allocation19] sm:$0x1]
    %v1743 = vperm.slane %v1741, 0
    %v1873 = vunpack.c.l.b16 %v1613
    %v1874 = vunpack.c.l.b16 %v1614
    %v1875 = vunpack.c.l.b16 %v1615
    %v1876 = vunpack.c.l.b16 %v1616
    %v1877 = vunpack.c.l.b16 %v1617
    %v1878 = vunpack.c.l.b16 %v1618
    %v1879 = vunpack.c.l.b16 %v1619
    %v1880 = vunpack.c.l.b16 %v1620
    %v1881 = vunpack.c.l.b16 %v1621
    %v1882 = vunpack.c.l.b16 %v1622
    %v1883 = vunpack.c.l.b16 %v1623
    %v1884 = vunpack.c.l.b16 %v1624
    %v1885 = vunpack.c.l.b16 %v1625
    %v1886 = vunpack.c.l.b16 %v1626
    %v1887 = vunpack.c.l.b16 %v1627
    %v1888 = vunpack.c.l.b16 %v1628
    %v1889 = vunpack.c.l.b16 %v1629
    %v1890 = vunpack.c.l.b16 %v1630
    %v1891 = vunpack.c.l.b16 %v1631
    %v1892 = vunpack.c.l.b16 %v1632
    %v1893 = vunpack.c.l.b16 %v1633
    %v1894 = vunpack.c.l.b16 %v1634
    %v1895 = vunpack.c.l.b16 %v1635
    %v1896 = vunpack.c.l.b16 %v1636
    %v1897 = vunpack.c.l.b16 %v1637
    %v1898 = vunpack.c.l.b16 %v1638
    %v1899 = vunpack.c.l.b16 %v1639
    %v1900 = vunpack.c.l.b16 %v1640
    %v1901 = vunpack.c.l.b16 %v1641
    %v1902 = vunpack.c.l.b16 %v1642
    %v1903 = vunpack.c.l.b16 %v1643
    %v1904 = vunpack.c.l.b16 %v1644
    %v1905 = vunpack.c.l.b16 %v1645
    %v1906 = vunpack.c.l.b16 %v1646
    %v1907 = vunpack.c.l.b16 %v1647
    %v1908 = vunpack.c.l.b16 %v1648
    %v1909 = vunpack.c.l.b16 %v1649
    %v1910 = vunpack.c.l.b16 %v1650
    %v1911 = vunpack.c.l.b16 %v1651
    %v1912 = vunpack.c.l.b16 %v1652
    %v1913 = vunpack.c.l.b16 %v1653
    %v1914 = vunpack.c.l.b16 %v1654
    %v1915 = vunpack.c.l.b16 %v1655
    %v1916 = vunpack.c.l.b16 %v1656
    %v1917 = vunpack.c.l.b16 %v1657
    %v1918 = vunpack.c.l.b16 %v1658
    %v1919 = vunpack.c.l.b16 %v1659
    %v1920 = vunpack.c.l.b16 %v1660
    %v1921 = vunpack.c.l.b16 %v1661
    %v1922 = vunpack.c.l.b16 %v1662
    %v1923 = vunpack.c.l.b16 %v1663
    %v1924 = vunpack.c.l.b16 %v1664
    %v1925 = vunpack.c.l.b16 %v1665
    %v1926 = vunpack.c.l.b16 %v1666
    %v1927 = vunpack.c.l.b16 %v1667
    %v1928 = vunpack.c.l.b16 %v1668
    %v1929 = vunpack.c.l.b16 %v1669
    %v1930 = vunpack.c.l.b16 %v1670
    %v1931 = vunpack.c.l.b16 %v1671
    %v1932 = vunpack.c.l.b16 %v1672
    %v1933 = vunpack.c.l.b16 %v1673
    %v1934 = vunpack.c.l.b16 %v1674
    %v1935 = vunpack.c.l.b16 %v1675
    %v1936 = vunpack.c.l.b16 %v1676
    %v1937 = vunpack.c.l.b16 %v1677
    %v1938 = vunpack.c.l.b16 %v1678
    %v1939 = vunpack.c.l.b16 %v1679
    %v1940 = vunpack.c.l.b16 %v1680
    %v1941 = vunpack.c.l.b16 %v1681
    %v1942 = vunpack.c.l.b16 %v1682
    %v1943 = vunpack.c.l.b16 %v1683
    %v1944 = vunpack.c.l.b16 %v1684
    %v1945 = vunpack.c.l.b16 %v1685
    %v1946 = vunpack.c.l.b16 %v1686
    %v1947 = vunpack.c.l.b16 %v1687
    %v1948 = vunpack.c.l.b16 %v1688
    %v1949 = vunpack.c.l.b16 %v1689
    %v1950 = vunpack.c.l.b16 %v1690
    %v1951 = vunpack.c.l.b16 %v1691
    %v1952 = vunpack.c.l.b16 %v1692
    %v1953 = vunpack.c.l.b16 %v1693
    %v1954 = vunpack.c.l.b16 %v1694
    %v1955 = vunpack.c.l.b16 %v1695
    %v1956 = vunpack.c.l.b16 %v1696
    %v1957 = vunpack.c.l.b16 %v1697
    %v1958 = vunpack.c.l.b16 %v1698
    %v1959 = vunpack.c.l.b16 %v1699
    %v1960 = vunpack.c.l.b16 %v1700
    %v1961 = vunpack.c.l.b16 %v1701
    %v1962 = vunpack.c.l.b16 %v1702
    %v1963 = vunpack.c.l.b16 %v1703
    %v1964 = vunpack.c.l.b16 %v1704
    %v1965 = vunpack.c.l.b16 %v1705
    %v1966 = vunpack.c.l.b16 %v1706
    %v1967 = vunpack.c.l.b16 %v1707
    %v1968 = vunpack.c.l.b16 %v1708
    %v1969 = vunpack.c.l.b16 %v1709
    %v1970 = vunpack.c.l.b16 %v1710
    %v1971 = vunpack.c.l.b16 %v1711
    %v1972 = vunpack.c.l.b16 %v1712
    %v1973 = vunpack.c.l.b16 %v1713
    %v1974 = vunpack.c.l.b16 %v1714
    %v1975 = vunpack.c.l.b16 %v1715
    %v1976 = vunpack.c.l.b16 %v1716
    %v1977 = vunpack.c.l.b16 %v1717
    %v1978 = vunpack.c.l.b16 %v1718
    %v1979 = vunpack.c.l.b16 %v1719
    %v1980 = vunpack.c.l.b16 %v1720
    %v1981 = vunpack.c.l.b16 %v1721
    %v1982 = vunpack.c.l.b16 %v1722
    %v1983 = vunpack.c.l.b16 %v1723
    %v1984 = vunpack.c.l.b16 %v1724
    %v1985 = vunpack.c.l.b16 %v1725
    %v1986 = vunpack.c.l.b16 %v1726
    %v1987 = vunpack.c.l.b16 %v1727
    %v1988 = vunpack.c.l.b16 %v1728
    %v1989 = vunpack.c.l.b16 %v1729
    %v1990 = vunpack.c.l.b16 %v1730
    %v1991 = vunpack.c.l.b16 %v1731
    %v1992 = vunpack.c.l.b16 %v1732
    %v1993 = vunpack.c.l.b16 %v1733
    %v1994 = vunpack.c.l.b16 %v1734
    %v1995 = vunpack.c.l.b16 %v1735
    %v1996 = vunpack.c.l.b16 %v1736
    %v1997 = vunpack.c.l.b16 %v1737
    %v1998 = vunpack.c.l.b16 %v1738
    %v1999 = vunpack.c.l.b16 %v1739
    %v2000 = vunpack.c.l.b16 %v1740
    %v2001 = vpack.c.b16 %v1874, %v1873
    %v2002 = vpack.c.b16 %v1876, %v1875
    %v2003 = vpack.c.b16 %v1878, %v1877
    %v2004 = vpack.c.b16 %v1880, %v1879
    %v2005 = vpack.c.b16 %v1882, %v1881
    %v2006 = vpack.c.b16 %v1884, %v1883
    %v2007 = vpack.c.b16 %v1886, %v1885
    %v2008 = vpack.c.b16 %v1888, %v1887
    %v2009 = vpack.c.b16 %v1890, %v1889
    %v2010 = vpack.c.b16 %v1892, %v1891
    %v2011 = vpack.c.b16 %v1894, %v1893
    %v2012 = vpack.c.b16 %v1896, %v1895
    %v2013 = vpack.c.b16 %v1898, %v1897
    %v2014 = vpack.c.b16 %v1900, %v1899
    %v2015 = vpack.c.b16 %v1902, %v1901
    %v2016 = vpack.c.b16 %v1904, %v1903
    %v2017 = vpack.c.b16 %v1906, %v1905
    %v2018 = vpack.c.b16 %v1908, %v1907
    %v2019 = vpack.c.b16 %v1910, %v1909
    %v2020 = vpack.c.b16 %v1912, %v1911
    %v2021 = vpack.c.b16 %v1914, %v1913
    %v2022 = vpack.c.b16 %v1916, %v1915
    %v2023 = vpack.c.b16 %v1918, %v1917
    %v2024 = vpack.c.b16 %v1920, %v1919
    %v2025 = vpack.c.b16 %v1922, %v1921
    %v2026 = vpack.c.b16 %v1924, %v1923
    %v2027 = vpack.c.b16 %v1926, %v1925
    %v2028 = vpack.c.b16 %v1928, %v1927
    %v2029 = vpack.c.b16 %v1930, %v1929
    %v2030 = vpack.c.b16 %v1932, %v1931
    %v2031 = vpack.c.b16 %v1934, %v1933
    %v2032 = vpack.c.b16 %v1936, %v1935
    %v2033 = vpack.c.b16 %v1938, %v1937
    %v2034 = vpack.c.b16 %v1940, %v1939
    %v2035 = vpack.c.b16 %v1942, %v1941
    %v2036 = vpack.c.b16 %v1944, %v1943
    %v2037 = vpack.c.b16 %v1946, %v1945
    %v2038 = vpack.c.b16 %v1948, %v1947
    %v2039 = vpack.c.b16 %v1950, %v1949
    %v2040 = vpack.c.b16 %v1952, %v1951
    %v2041 = vpack.c.b16 %v1954, %v1953
    %v2042 = vpack.c.b16 %v1956, %v1955
    %v2043 = vpack.c.b16 %v1958, %v1957
    %v2044 = vpack.c.b16 %v1960, %v1959
    %v2045 = vpack.c.b16 %v1962, %v1961
    %v2046 = vpack.c.b16 %v1964, %v1963
    %v2047 = vpack.c.b16 %v1966, %v1965
    %v2048 = vpack.c.b16 %v1968, %v1967
    %v2049 = vpack.c.b16 %v1970, %v1969
    %v2050 = vpack.c.b16 %v1972, %v1971
    %v2051 = vpack.c.b16 %v1974, %v1973
    %v2052 = vpack.c.b16 %v1976, %v1975
    %v2053 = vpack.c.b16 %v1978, %v1977
    %v2054 = vpack.c.b16 %v1980, %v1979
    %v2055 = vpack.c.b16 %v1982, %v1981
    %v2056 = vpack.c.b16 %v1984, %v1983
    %v2057 = vpack.c.b16 %v1986, %v1985
    %v2058 = vpack.c.b16 %v1988, %v1987
    %v2059 = vpack.c.b16 %v1990, %v1989
    %v2060 = vpack.c.b16 %v1992, %v1991
    %v2061 = vpack.c.b16 %v1994, %v1993
    %v2062 = vpack.c.b16 %v1996, %v1995
    %v2063 = vpack.c.b16 %v1998, %v1997
    %v2064 = vpack.c.b16 %v2000, %v1999
    %2129 = vmatpush.bf16.msra.mxu0 %v2008
    %2130 = vmatpush.bf16.msra.mxu0 %v2007
    %2131 = vmatpush.bf16.msra.mxu0 %v2006
    %2132 = vmatpush.bf16.msra.mxu0 %v2005
    %2133 = vmatpush.bf16.msra.mxu0 %v2004
    %2134 = vmatpush.bf16.msra.mxu0 %v2003
    %2135 = vmatpush.bf16.msra.mxu0 %v2002
    %2136 = vmatpush.bf16.msra.mxu0 %v2001
    %2137 = vmatmul.bf16.gmra.mxu0 %v1605
    %v2138 = vpop.f32.mrf.mxu0
    %v2139 = vadd.f32 %v1743, %v2138
    %v2140 = vpop.f32.mrf.mxu0
    %2141 = vdwg.mxu0
    %2142 = vmatpush.bf16.msra.mxu0 %v2016
    %2143 = vmatpush.bf16.msra.mxu0 %v2015
    %2144 = vmatpush.bf16.msra.mxu0 %v2014
    %2145 = vmatpush.bf16.msra.mxu0 %v2013
    %2146 = vmatpush.bf16.msra.mxu0 %v2012
    %2147 = vmatpush.bf16.msra.mxu0 %v2011
    %2148 = vmatpush.bf16.msra.mxu0 %v2010
    %2149 = vmatpush.bf16.msra.mxu0 %v2009
    %2150 = vmatmul.bf16.gmra.mxu0 %v1606
    %v2151 = vpop.f32.mrf.mxu0
    %v2152 = vadd.f32 %v2139, %v2151
    %v2153 = vpop.f32.mrf.mxu0
    %2154 = vdwg.mxu0
    %2155 = vmatpush.bf16.msra.mxu0 %v2024
    %2156 = vmatpush.bf16.msra.mxu0 %v2023
    %2157 = vmatpush.bf16.msra.mxu0 %v2022
    %2158 = vmatpush.bf16.msra.mxu0 %v2021
    %2159 = vmatpush.bf16.msra.mxu0 %v2020
    %2160 = vmatpush.bf16.msra.mxu0 %v2019
    %2161 = vmatpush.bf16.msra.mxu0 %v2018
    %2162 = vmatpush.bf16.msra.mxu0 %v2017
    %2163 = vmatmul.bf16.gmra.mxu0 %v1607
    %v2164 = vpop.f32.mrf.mxu0
    %v2165 = vadd.f32 %v2152, %v2164
    %v2166 = vpop.f32.mrf.mxu0
    %2167 = vdwg.mxu0
    %2168 = vmatpush.bf16.msra.mxu0 %v2032
    %2169 = vmatpush.bf16.msra.mxu0 %v2031
    %2170 = vmatpush.bf16.msra.mxu0 %v2030
    %2171 = vmatpush.bf16.msra.mxu0 %v2029
    %2172 = vmatpush.bf16.msra.mxu0 %v2028
    %2173 = vmatpush.bf16.msra.mxu0 %v2027
    %2174 = vmatpush.bf16.msra.mxu0 %v2026
    %2175 = vmatpush.bf16.msra.mxu0 %v2025
    %2176 = vmatmul.bf16.gmra.mxu0 %v1608
    %v2177 = vpop.f32.mrf.mxu0
    %v2178 = vadd.f32 %v2165, %v2177
    %v2179 = vpop.f32.mrf.mxu0
    %2180 = vdwg.mxu0
    %2181 = vmatpush.bf16.msra.mxu0 %v2040
    %2182 = vmatpush.bf16.msra.mxu0 %v2039
    %2183 = vmatpush.bf16.msra.mxu0 %v2038
    %2184 = vmatpush.bf16.msra.mxu0 %v2037
    %2185 = vmatpush.bf16.msra.mxu0 %v2036
    %2186 = vmatpush.bf16.msra.mxu0 %v2035
    %2187 = vmatpush.bf16.msra.mxu0 %v2034
    %2188 = vmatpush.bf16.msra.mxu0 %v2033
    %2189 = vmatmul.bf16.gmra.mxu0 %v1609
    %v2190 = vpop.f32.mrf.mxu0
    %v2191 = vadd.f32 %v2178, %v2190
    %v2192 = vpop.f32.mrf.mxu0
    %2193 = vdwg.mxu0
    %2194 = vmatpush.bf16.msra.mxu0 %v2048
    %2195 = vmatpush.bf16.msra.mxu0 %v2047
    %2196 = vmatpush.bf16.msra.mxu0 %v2046
    %2197 = vmatpush.bf16.msra.mxu0 %v2045
    %2198 = vmatpush.bf16.msra.mxu0 %v2044
    %2199 = vmatpush.bf16.msra.mxu0 %v2043
    %2200 = vmatpush.bf16.msra.mxu0 %v2042
    %2201 = vmatpush.bf16.msra.mxu0 %v2041
    %2202 = vmatmul.bf16.gmra.mxu0 %v1610
    %v2203 = vpop.f32.mrf.mxu0
    %v2204 = vadd.f32 %v2191, %v2203
    %v2205 = vpop.f32.mrf.mxu0
    %2206 = vdwg.mxu0
    %2207 = vmatpush.bf16.msra.mxu0 %v2056
    %2208 = vmatpush.bf16.msra.mxu0 %v2055
    %2209 = vmatpush.bf16.msra.mxu0 %v2054
    %2210 = vmatpush.bf16.msra.mxu0 %v2053
    %2211 = vmatpush.bf16.msra.mxu0 %v2052
    %2212 = vmatpush.bf16.msra.mxu0 %v2051
    %2213 = vmatpush.bf16.msra.mxu0 %v2050
    %2214 = vmatpush.bf16.msra.mxu0 %v2049
    %2215 = vmatmul.bf16.gmra.mxu0 %v1611
    %v2216 = vpop.f32.mrf.mxu0
    %v2217 = vadd.f32 %v2204, %v2216
    %v2218 = vpop.f32.mrf.mxu0
    %2219 = vdwg.mxu0
    %2220 = vmatpush.bf16.msra.mxu0 %v2064
    %2221 = vmatpush.bf16.msra.mxu0 %v2063
    %2222 = vmatpush.bf16.msra.mxu0 %v2062
    %2223 = vmatpush.bf16.msra.mxu0 %v2061
    %2224 = vmatpush.bf16.msra.mxu0 %v2060
    %2225 = vmatpush.bf16.msra.mxu0 %v2059
    %2226 = vmatpush.bf16.msra.mxu0 %v2058
    %2227 = vmatpush.bf16.msra.mxu0 %v2057
    %2228 = vmatmul.bf16.gmra.mxu0 %v1612
    %v2229 = vpop.f32.mrf.mxu0
    %v2230 = vadd.f32 %v2217, %v2229
    %v2231 = vpop.f32.mrf.mxu0
    %2232 = vdwg.mxu0
    %2233 = vst [vmem:[#allocation20] sm:$0xff] %v2230
    // Predicated region
    $region90: #{tpu_custom_call.1} parent=1 // pred_check
      _
    $region91: #{tpu_custom_call.1} parent=1 // pred_check_branch
      %2235 = sbr.rel (0) target = $region93
    $region92: #{tpu_custom_call.1} parent=1 // pred_region
      %2237 = vsyncadd [#allocation4], 0
      %s2239 = sshll.u32 [#allocation20], 4
      %s2240 = int_to_ptr.vmem [resolvable:$true] %s2239
      %s2241 = sshll.u32 %s11, 4
      %s2242 = int_to_ptr.hbm [resolvable:$true] %s2241
      %2244 = dma.vmem_to_hbm [thread:$0]  %s2240, 128, %s2242, [#allocation4]
    $region93: #{tpu_custom_call.1} parent=1 // pred_fallthru
      _
    // Predicated region
    $region94: #{tpu_custom_call.1} parent=1 // pred_check
      _
    $region95: #{tpu_custom_call.1} parent=1 // pred_check_branch
      %2246 = sbr.rel (0) target = $region97
    $region96: #{tpu_custom_call.1} parent=1 // pred_region
      %2248 = dma.done [#allocation4], 128
    $region97: #{tpu_custom_call.1} parent=1 // pred_fallthru
      _
    %2249 = vsyncpa [#allocation3], 1
    %2250 = vsyncpa [#allocation6], 1
    %2251 = vsyncpa [#allocation9], 1
    %2252 = vsyncpa [#allocation12], 1
    %2253 = vsyncpa [#allocation15], 1
    %2254 = vsyncpa [#allocation18], 1
    %2255 = vsyncpa [#allocation4], 1

</llo_original>
